<compile_context>
chip_gen: v5e
topology: v5e:2x2
jax: 0.10.0
libtpu: 0.0.40
codegen_flags: <defaults>
</compile_context>

<pallas_src>
import functools

import numpy as np
import jax
import jax.numpy as jnp
from jax.experimental import pallas as pl
from jax.experimental.pallas import tpu as pltpu

DIL = 4      # dilation / padding of the dilated 3x3 convs
CR_PAD = 8   # reduced-channel count padded up to one full sublane granule


def _tap_offsets():
    return [(DIL * (kh - 1), DIL * (kw - 1)) for kh in range(3) for kw in range(3)]


def spatial_kernel(x_ref, w_ref, mask_ref, bf_ref, o_ref, im_ref, *,
                   H, W, C, off_w0, off_wd0, off_wd1, off_b):
    # x_ref   : (1, C, NB*HW)   VMEM  activations, NB samples lane-flattened
    # w_ref   : (8, slab_w)     VMEM  all conv weights/biases in one slab
    # mask_ref: (72, NB*HW)     VMEM  precomputed 0/1 "same"-padding masks
    # bf_ref  : (1,)            SMEM  final 1x1 conv bias
    # o_ref   : (1, 1, NB*HW)   VMEM  single-channel spatial gate
    # im_ref  : (72, NB*HW)     VMEM  scratch, im2col slab
    NBHW = x_ref.shape[-1]
    K9 = 9 * CR_PAD

    x2d = x_ref[0]                                            # (C, NBHW)

    # static, lane-aligned slices into the packed weight slab
    w0 = w_ref[:, off_w0:off_w0 + C]                          # (8, C)
    wd0 = w_ref[:, off_wd0:off_wd0 + K9]                      # (8, 72)
    wd1 = w_ref[:, off_wd1:off_wd1 + K9]                      # (8, 72)
    b0 = w_ref[:, off_b + 0:off_b + 1]                        # (8, 1)
    bd0 = w_ref[:, off_b + 1:off_b + 2]
    bd1 = w_ref[:, off_b + 2:off_b + 3]
    wf = w_ref[:, off_b + 3:off_b + 4]

    # ---- 1x1 reduce conv (+ folded BN) + ReLU: one MXU matmul --------------
    z = jnp.dot(w0, x2d, preferred_element_type=jnp.float32) + b0
    z = jnp.maximum(z, 0.0)                                   # (8, NBHW)

    # ---- dilated 3x3 conv (+ folded BN) + ReLU: im2col + MXU matmul --------
    def dilated(zin, wd, bd):
        for t, (dh, dw) in enumerate(_tap_offsets()):
            lo = CR_PAD * t
            if dh == 0 and dw == 0:                           # center tap: no shift/mask
                im_ref[lo:lo + CR_PAD, :] = zin
            else:
                shift = (-(dh * W + dw)) % NBHW               # static python int
                s = pltpu.roll(zin, shift, axis=1)            # XLU lane rotate
                im_ref[lo:lo + CR_PAD, :] = s * mask_ref[lo:lo + CR_PAD, :]
        out = jnp.dot(wd, im_ref[...], preferred_element_type=jnp.float32) + bd
        return jnp.maximum(out, 0.0)                          # (8, NBHW)

    z = dilated(z, wd0, bd0)
    z = dilated(z, wd1, bd1)

    # ---- final 1x1 conv -> single-channel gate ------------------------------
    gate = jnp.sum(wf * z, axis=0, keepdims=True) + bf_ref[0]
    o_ref[...] = gate[None]                                   # (1, 1, NBHW)


def _round128(n):
    return ((n + 127) // 128) * 128


def spatial_forward(x, w0, b0, wd0_4d, bd0, wd1_4d, bd1, wf, bf, *, expand=True):
    """x: (N, C, H, W); w0: (Cr, C); wd*: (Cr, Cr, 3, 3); wf: (Cr,); bf: (1,)."""
    N, C, H, W = x.shape
    Cr = w0.shape[0]
    HW = H * W

    # Merge batch samples per grid step (amortize ~0.35us/step overhead), but
    # keep 2 "parallel" steps for N >= 2 so v7x's two TensorCores both work.
    n_steps = 1 if N == 1 else 2
    NB = -(-N // n_steps)               # ceil
    N_pad = n_steps * NB
    NBHW = NB * HW

    x2 = x.reshape(N, C, HW)
    if N_pad != N:
        x2 = jnp.pad(x2, ((0, N_pad - N), (0, 0), (0, 0)))
    # sample-major lane layout: lanes [s*HW, (s+1)*HW) hold sample s
    x3 = (x2.reshape(n_steps, NB, C, HW)
            .transpose(0, 2, 1, 3)
            .reshape(n_steps, C, NBHW))

    # ---- pack all small weights / biases into one lane-aligned VMEM slab ----
    def pad_rows(v):                                          # (Cr, ...) -> (8, ...)
        return jnp.pad(v, ((0, CR_PAD - Cr),) + ((0, 0),) * (v.ndim - 1))

    def im2col_weights(wd):                                   # (Cr,Cr,3,3) -> (8,72)
        w = jnp.transpose(wd, (0, 2, 3, 1))                   # (co, kh, kw, ci)
        w = jnp.pad(w, ((0, CR_PAD - Cr), (0, 0), (0, 0), (0, CR_PAD - Cr)))
        return w.reshape(CR_PAD, 9 * CR_PAD)

    K9 = 9 * CR_PAD
    off_w0 = 0
    off_wd0 = _round128(C)
    off_wd1 = off_wd0 + _round128(K9)
    off_b = off_wd1 + _round128(K9)
    slab_w = off_b + 128

    def place(slab, off, v):
        return slab.at[:, off:off + v.shape[1]].set(v)

    wslab = jnp.zeros((CR_PAD, slab_w), jnp.float32)
    wslab = place(wslab, off_w0, pad_rows(w0))
    wslab = place(wslab, off_wd0, im2col_weights(wd0_4d))
    wslab = place(wslab, off_wd1, im2col_weights(wd1_4d))
    biases = jnp.stack([pad_rows(b0), pad_rows(bd0), pad_rows(bd1), pad_rows(wf)],
                       axis=1)                                # (8, 4)
    wslab = place(wslab, off_b, biases)

    # ---- precomputed boundary masks (trace-time numpy; per-sample h/w) ------
    pos = np.arange(NBHW)
    q = pos % HW                       # local spatial index (per sample)
    hh = q // W
    ww = q % W
    rows = []
    for dh, dw in _tap_offsets():
        valid = np.ones(NBHW, dtype=bool)
        if dh < 0:
            valid &= hh >= -dh
        if dh > 0:
            valid &= hh < H - dh
        if dw < 0:
            valid &= ww >= -dw
        if dw > 0:
            valid &= ww < W - dw
        rows.append(np.broadcast_to(valid.astype(np.float32), (CR_PAD, NBHW)))
    mask = jnp.asarray(np.concatenate(rows, axis=0))          # (72, NBHW)

    kern = functools.partial(spatial_kernel, H=H, W=W, C=C,
                             off_w0=off_w0, off_wd0=off_wd0,
                             off_wd1=off_wd1, off_b=off_b)
    gate = pl.pallas_call(
        kern,
        out_shape=jax.ShapeDtypeStruct((n_steps, 1, NBHW), jnp.float32),
        grid=(n_steps,),
        in_specs=[
            pl.BlockSpec((1, C, NBHW), lambda g: (g, 0, 0)),
            pl.BlockSpec((CR_PAD, slab_w), lambda g: (0, 0)),
            pl.BlockSpec((9 * CR_PAD, NBHW), lambda g: (0, 0)),
            pl.BlockSpec(memory_space=pltpu.MemorySpace.SMEM),
        ],
        out_specs=pl.BlockSpec((1, 1, NBHW), lambda g: (g, 0, 0)),
        scratch_shapes=[pltpu.VMEM((9 * CR_PAD, NBHW), jnp.float32)],
        compiler_params=pltpu.CompilerParams(
            dimension_semantics=("parallel",)),
    )(x3, wslab, mask, bf)

    g = gate.reshape(N_pad, 1, H, W)[:N]
    if not expand:
        return g   # preferred: let the downstream BAM consumer fuse the broadcast
    # expand_as(in_tensor): broadcast the 1-channel gate over all C channels in
    # XLA (module-semantics parity; fuses into downstream consumers).
    return jnp.broadcast_to(g, (N, C, H, W))


def reference(x, w0, b0, wd0_4d, bd0, wd1_4d, bd1, wf, bf):
    prec = jax.lax.Precision.HIGHEST
    y = jnp.einsum('oc,nchw->nohw', w0, x, precision=prec) + b0[None, :, None, None]
    y = jnp.maximum(y, 0.0)
    for wd, bd in ((wd0_4d, bd0), (wd1_4d, bd1)):
        y = jax.lax.conv_general_dilated(
            y, wd, window_strides=(1, 1), padding=((DIL, DIL), (DIL, DIL)),
            rhs_dilation=(DIL, DIL),
            dimension_numbers=('NCHW', 'OIHW', 'NCHW'),
            precision=prec) + bd[None, :, None, None]
        y = jnp.maximum(y, 0.0)
    g = jnp.einsum('c,nchw->nhw', wf, y, precision=prec)[:, None, :, :] + bf[0]
    return jnp.broadcast_to(g, x.shape)


if __name__ == "__main__":
    N, C, H, W = 4, 64, 16, 16      # gate_channel=64
    RR = 16                         # reduction_ratio
    Cr = C // RR                    # = 4

    keys = iter(jax.random.split(jax.random.PRNGKey(0), 32))
    x = jax.random.normal(next(keys), (N, C, H, W), jnp.float32)

    def bn_fold(n):
        gamma = 1.0 + 0.1 * jax.random.normal(next(keys), (n,), jnp.float32)
        beta = 0.1 * jax.random.normal(next(keys), (n,), jnp.float32)
        mean = 0.1 * jax.random.normal(next(keys), (n,), jnp.float32)
        var = 0.5 + jnp.abs(jax.random.normal(next(keys), (n,), jnp.float32))
        s = gamma / jnp.sqrt(var + 1e-5)
        t = beta - s * mean
        return s, t

    # 1x1 reduce conv + BN -> folded weight / bias
    w0 = 0.1 * jax.random.normal(next(keys), (Cr, C), jnp.float32)
    b0 = 0.1 * jax.random.normal(next(keys), (Cr,), jnp.float32)
    s0, t0 = bn_fold(Cr)
    w0f, b0f = s0[:, None] * w0, s0 * b0 + t0

    def dil_conv():
        wd = 0.1 * jax.random.normal(next(keys), (Cr, Cr, 3, 3), jnp.float32)
        bd = 0.1 * jax.random.normal(next(keys), (Cr,), jnp.float32)
        s, t = bn_fold(Cr)
        return s[:, None, None, None] * wd, s * bd + t

    wd0_4d, bd0f = dil_conv()
    wd1_4d, bd1f = dil_conv()

    wf = 0.1 * jax.random.normal(next(keys), (Cr,), jnp.float32)
    bf = 0.1 * jax.random.normal(next(keys), (1,), jnp.float32)

    out = spatial_forward(x, w0f, b0f, wd0_4d, bd0f, wd1_4d, bd1f, wf, bf)
    out = jax.block_until_ready(out)

    ref = reference(x, w0f, b0f, wd0_4d, bd0f, wd1_4d, bd1f, wf, bf)
    if not bool(jnp.allclose(out, ref, atol=1e-2, rtol=1e-2)):
        err = float(jnp.max(jnp.abs(out - ref)))
        raise AssertionError(f"Pallas kernel does not match reference (max err {err})")
    print("KERNEL_OK")
</pallas_src>

<mosaic_0001>
module attributes {stable_mosaic.version = 11 : i64} {
  func.func @spatial_kernel(%arg0: i32, %arg1: memref<1x64x512xf32, #tpu.memory_space<vmem>>, %arg2: memref<8x512xf32, #tpu.memory_space<vmem>>, %arg3: memref<72x512xf32, #tpu.memory_space<vmem>>, %arg4: memref<1xf32, #tpu.memory_space<smem>>, %arg5: memref<1x1x512xf32, #tpu.memory_space<vmem>>, %arg6: memref<72x512xf32, #tpu.memory_space<vmem>>) attributes {dimension_semantics = [#tpu.dimension_semantics<parallel>], iteration_bounds = array<i64: 2>, scalar_prefetch = 0 : i64, scratch_operands = 1 : i64, tpu.core_type = #tpu.core_type<tc>, window_params = [{transform_indices = @transform_0, window_bounds = array<i64: 1, 64, 512>}, {pipeline_mode = #tpu.pipeline_mode<synchronous>, transform_indices = @transform_1, window_bounds = array<i64: 8, 512>}, {pipeline_mode = #tpu.pipeline_mode<synchronous>, transform_indices = @transform_2, window_bounds = array<i64: 72, 512>}, {transform_indices = @transform_3, window_bounds = array<i64: 1>}, {transform_indices = @transform_4, window_bounds = array<i64: 1, 1, 512>}]} {
    %c0 = arith.constant 0 : index
    %c0_0 = arith.constant 0 : index
    %c0_1 = arith.constant 0 : index
    %0 = vector.load %arg1[%c0, %c0_0, %c0_1] : memref<1x64x512xf32, #tpu.memory_space<vmem>>, vector<1x64x512xf32>
    %1 = vector.shape_cast %0 : vector<1x64x512xf32> to vector<64x512xf32>
    %c0_2 = arith.constant 0 : index
    %c0_3 = arith.constant 0 : index
    %2 = vector.load %arg2[%c0_2, %c0_3] : memref<8x512xf32, #tpu.memory_space<vmem>>, vector<8x64xf32>
    %c0_4 = arith.constant 0 : index
    %c128 = arith.constant 128 : index
    %3 = vector.load %arg2[%c0_4, %c128] : memref<8x512xf32, #tpu.memory_space<vmem>>, vector<8x72xf32>
    %c0_5 = arith.constant 0 : index
    %c256 = arith.constant 256 : index
    %4 = vector.load %arg2[%c0_5, %c256] : memref<8x512xf32, #tpu.memory_space<vmem>>, vector<8x72xf32>
    %c0_6 = arith.constant 0 : index
    %c384 = arith.constant 384 : index
    %5 = vector.load %arg2[%c0_6, %c384] : memref<8x512xf32, #tpu.memory_space<vmem>>, vector<8x1xf32>
    %c0_7 = arith.constant 0 : index
    %c385 = arith.constant 385 : index
    %6 = vector.load %arg2[%c0_7, %c385] : memref<8x512xf32, #tpu.memory_space<vmem>>, vector<8x1xf32>
    %c0_8 = arith.constant 0 : index
    %c386 = arith.constant 386 : index
    %7 = vector.load %arg2[%c0_8, %c386] : memref<8x512xf32, #tpu.memory_space<vmem>>, vector<8x1xf32>
    %c0_9 = arith.constant 0 : index
    %c387 = arith.constant 387 : index
    %8 = vector.load %arg2[%c0_9, %c387] : memref<8x512xf32, #tpu.memory_space<vmem>>, vector<8x1xf32>
    %cst = arith.constant dense<0.000000e+00> : vector<8x512xf32>
    %9 = tpu.matmul %2, %1, %cst {dimension_numbers = #tpu.dot_dimension_numbers<[1], [0], [0], [1], [0, 0, 1, 1], [], []>} : vector<8x64xf32>, vector<64x512xf32>, vector<8x512xf32> -> vector<8x512xf32>
    %10 = vector.broadcast %5 : vector<8x1xf32> to vector<8x512xf32>
    %11 = arith.addf %9, %10 : vector<8x512xf32>
    %cst_10 = arith.constant 0.000000e+00 : f32
    %12 = vector.broadcast %cst_10 : f32 to vector<8x512xf32>
    %13 = arith.maximumf %11, %12 : vector<8x512xf32>
    %c68_i32 = arith.constant 68 : i32
    %14 = tpu.dynamic_rotate %13 by %c68_i32 dim 1 : vector<8x512xf32>, i32 -> vector<8x512xf32>
    %c0_11 = arith.constant 0 : index
    %c0_12 = arith.constant 0 : index
    %15 = vector.load %arg3[%c0_11, %c0_12] : memref<72x512xf32, #tpu.memory_space<vmem>>, vector<8x512xf32>
    %16 = arith.mulf %14, %15 : vector<8x512xf32>
    %c0_13 = arith.constant 0 : index
    %c0_14 = arith.constant 0 : index
    %17 = vector.load %arg6[%c0_13, %c0_14] : memref<72x512xf32, #tpu.memory_space<vmem>>, vector<8x512xf32>
    tpu.vector_store %arg6[%c0_13, %c0_14], %16 {strides = array<i32>} : memref<72x512xf32, #tpu.memory_space<vmem>>, vector<8x512xf32>,
    %c64_i32 = arith.constant 64 : i32
    %18 = tpu.dynamic_rotate %13 by %c64_i32 dim 1 : vector<8x512xf32>, i32 -> vector<8x512xf32>
    %c8 = arith.constant 8 : index
    %c0_15 = arith.constant 0 : index
    %19 = vector.load %arg3[%c8, %c0_15] : memref<72x512xf32, #tpu.memory_space<vmem>>, vector<8x512xf32>
    %20 = arith.mulf %18, %19 : vector<8x512xf32>
    %c8_16 = arith.constant 8 : index
    %c0_17 = arith.constant 0 : index
    %21 = vector.load %arg6[%c8_16, %c0_17] : memref<72x512xf32, #tpu.memory_space<vmem>>, vector<8x512xf32>
    tpu.vector_store %arg6[%c8_16, %c0_17], %20 {strides = array<i32>} : memref<72x512xf32, #tpu.memory_space<vmem>>, vector<8x512xf32>,
    %c60_i32 = arith.constant 60 : i32
    %22 = tpu.dynamic_rotate %13 by %c60_i32 dim 1 : vector<8x512xf32>, i32 -> vector<8x512xf32>
    %c16 = arith.constant 16 : index
    %c0_18 = arith.constant 0 : index
    %23 = vector.load %arg3[%c16, %c0_18] : memref<72x512xf32, #tpu.memory_space<vmem>>, vector<8x512xf32>
    %24 = arith.mulf %22, %23 : vector<8x512xf32>
    %c16_19 = arith.constant 16 : index
    %c0_20 = arith.constant 0 : index
    %25 = vector.load %arg6[%c16_19, %c0_20] : memref<72x512xf32, #tpu.memory_space<vmem>>, vector<8x512xf32>
    tpu.vector_store %arg6[%c16_19, %c0_20], %24 {strides = array<i32>} : memref<72x512xf32, #tpu.memory_space<vmem>>, vector<8x512xf32>,
    %c4_i32 = arith.constant 4 : i32
    %26 = tpu.dynamic_rotate %13 by %c4_i32 dim 1 : vector<8x512xf32>, i32 -> vector<8x512xf32>
    %c24 = arith.constant 24 : index
    %c0_21 = arith.constant 0 : index
    %27 = vector.load %arg3[%c24, %c0_21] : memref<72x512xf32, #tpu.memory_space<vmem>>, vector<8x512xf32>
    %28 = arith.mulf %26, %27 : vector<8x512xf32>
    %c24_22 = arith.constant 24 : index
    %c0_23 = arith.constant 0 : index
    %29 = vector.load %arg6[%c24_22, %c0_23] : memref<72x512xf32, #tpu.memory_space<vmem>>, vector<8x512xf32>
    tpu.vector_store %arg6[%c24_22, %c0_23], %28 {strides = array<i32>} : memref<72x512xf32, #tpu.memory_space<vmem>>, vector<8x512xf32>,
    %c32 = arith.constant 32 : index
    %c0_24 = arith.constant 0 : index
    %30 = vector.load %arg6[%c32, %c0_24] : memref<72x512xf32, #tpu.memory_space<vmem>>, vector<8x512xf32>
    tpu.vector_store %arg6[%c32, %c0_24], %13 {strides = array<i32>} : memref<72x512xf32, #tpu.memory_space<vmem>>, vector<8x512xf32>,
    %c508_i32 = arith.constant 508 : i32
    %31 = tpu.dynamic_rotate %13 by %c508_i32 dim 1 : vector<8x512xf32>, i32 -> vector<8x512xf32>
    %c40 = arith.constant 40 : index
    %c0_25 = arith.constant 0 : index
    %32 = vector.load %arg3[%c40, %c0_25] : memref<72x512xf32, #tpu.memory_space<vmem>>, vector<8x512xf32>
    %33 = arith.mulf %31, %32 : vector<8x512xf32>
    %c40_26 = arith.constant 40 : index
    %c0_27 = arith.constant 0 : index
    %34 = vector.load %arg6[%c40_26, %c0_27] : memref<72x512xf32, #tpu.memory_space<vmem>>, vector<8x512xf32>
    tpu.vector_store %arg6[%c40_26, %c0_27], %33 {strides = array<i32>} : memref<72x512xf32, #tpu.memory_space<vmem>>, vector<8x512xf32>,
    %c452_i32 = arith.constant 452 : i32
    %35 = tpu.dynamic_rotate %13 by %c452_i32 dim 1 : vector<8x512xf32>, i32 -> vector<8x512xf32>
    %c48 = arith.constant 48 : index
    %c0_28 = arith.constant 0 : index
    %36 = vector.load %arg3[%c48, %c0_28] : memref<72x512xf32, #tpu.memory_space<vmem>>, vector<8x512xf32>
    %37 = arith.mulf %35, %36 : vector<8x512xf32>
    %c48_29 = arith.constant 48 : index
    %c0_30 = arith.constant 0 : index
    %38 = vector.load %arg6[%c48_29, %c0_30] : memref<72x512xf32, #tpu.memory_space<vmem>>, vector<8x512xf32>
    tpu.vector_store %arg6[%c48_29, %c0_30], %37 {strides = array<i32>} : memref<72x512xf32, #tpu.memory_space<vmem>>, vector<8x512xf32>,
    %c448_i32 = arith.constant 448 : i32
    %39 = tpu.dynamic_rotate %13 by %c448_i32 dim 1 : vector<8x512xf32>, i32 -> vector<8x512xf32>
    %c56 = arith.constant 56 : index
    %c0_31 = arith.constant 0 : index
    %40 = vector.load %arg3[%c56, %c0_31] : memref<72x512xf32, #tpu.memory_space<vmem>>, vector<8x512xf32>
    %41 = arith.mulf %39, %40 : vector<8x512xf32>
    %c56_32 = arith.constant 56 : index
    %c0_33 = arith.constant 0 : index
    %42 = vector.load %arg6[%c56_32, %c0_33] : memref<72x512xf32, #tpu.memory_space<vmem>>, vector<8x512xf32>
    tpu.vector_store %arg6[%c56_32, %c0_33], %41 {strides = array<i32>} : memref<72x512xf32, #tpu.memory_space<vmem>>, vector<8x512xf32>,
    %c444_i32 = arith.constant 444 : i32
    %43 = tpu.dynamic_rotate %13 by %c444_i32 dim 1 : vector<8x512xf32>, i32 -> vector<8x512xf32>
    %c64 = arith.constant 64 : index
    %c0_34 = arith.constant 0 : index
    %44 = vector.load %arg3[%c64, %c0_34] : memref<72x512xf32, #tpu.memory_space<vmem>>, vector<8x512xf32>
    %45 = arith.mulf %43, %44 : vector<8x512xf32>
    %c64_35 = arith.constant 64 : index
    %c0_36 = arith.constant 0 : index
    %46 = vector.load %arg6[%c64_35, %c0_36] : memref<72x512xf32, #tpu.memory_space<vmem>>, vector<8x512xf32>
    tpu.vector_store %arg6[%c64_35, %c0_36], %45 {strides = array<i32>} : memref<72x512xf32, #tpu.memory_space<vmem>>, vector<8x512xf32>,
    %c0_37 = arith.constant 0 : index
    %c0_38 = arith.constant 0 : index
    %47 = vector.load %arg6[%c0_37, %c0_38] : memref<72x512xf32, #tpu.memory_space<vmem>>, vector<72x512xf32>
    %cst_39 = arith.constant dense<0.000000e+00> : vector<8x512xf32>
    %48 = tpu.matmul %3, %47, %cst_39 {dimension_numbers = #tpu.dot_dimension_numbers<[1], [0], [0], [1], [0, 0, 1, 1], [], []>} : vector<8x72xf32>, vector<72x512xf32>, vector<8x512xf32> -> vector<8x512xf32>
    %49 = vector.broadcast %6 : vector<8x1xf32> to vector<8x512xf32>
    %50 = arith.addf %48, %49 : vector<8x512xf32>
    %cst_40 = arith.constant 0.000000e+00 : f32
    %51 = vector.broadcast %cst_40 : f32 to vector<8x512xf32>
    %52 = arith.maximumf %50, %51 : vector<8x512xf32>
    %c68_i32_41 = arith.constant 68 : i32
    %53 = tpu.dynamic_rotate %52 by %c68_i32_41 dim 1 : vector<8x512xf32>, i32 -> vector<8x512xf32>
    %c0_42 = arith.constant 0 : index
    %c0_43 = arith.constant 0 : index
    %54 = vector.load %arg3[%c0_42, %c0_43] : memref<72x512xf32, #tpu.memory_space<vmem>>, vector<8x512xf32>
    %55 = arith.mulf %53, %54 : vector<8x512xf32>
    %c0_44 = arith.constant 0 : index
    %c0_45 = arith.constant 0 : index
    %56 = vector.load %arg6[%c0_44, %c0_45] : memref<72x512xf32, #tpu.memory_space<vmem>>, vector<8x512xf32>
    tpu.vector_store %arg6[%c0_44, %c0_45], %55 {strides = array<i32>} : memref<72x512xf32, #tpu.memory_space<vmem>>, vector<8x512xf32>,
    %c64_i32_46 = arith.constant 64 : i32
    %57 = tpu.dynamic_rotate %52 by %c64_i32_46 dim 1 : vector<8x512xf32>, i32 -> vector<8x512xf32>
    %c8_47 = arith.constant 8 : index
    %c0_48 = arith.constant 0 : index
    %58 = vector.load %arg3[%c8_47, %c0_48] : memref<72x512xf32, #tpu.memory_space<vmem>>, vector<8x512xf32>
    %59 = arith.mulf %57, %58 : vector<8x512xf32>
    %c8_49 = arith.constant 8 : index
    %c0_50 = arith.constant 0 : index
    %60 = vector.load %arg6[%c8_49, %c0_50] : memref<72x512xf32, #tpu.memory_space<vmem>>, vector<8x512xf32>
    tpu.vector_store %arg6[%c8_49, %c0_50], %59 {strides = array<i32>} : memref<72x512xf32, #tpu.memory_space<vmem>>, vector<8x512xf32>,
    %c60_i32_51 = arith.constant 60 : i32
    %61 = tpu.dynamic_rotate %52 by %c60_i32_51 dim 1 : vector<8x512xf32>, i32 -> vector<8x512xf32>
    %c16_52 = arith.constant 16 : index
    %c0_53 = arith.constant 0 : index
    %62 = vector.load %arg3[%c16_52, %c0_53] : memref<72x512xf32, #tpu.memory_space<vmem>>, vector<8x512xf32>
    %63 = arith.mulf %61, %62 : vector<8x512xf32>
    %c16_54 = arith.constant 16 : index
    %c0_55 = arith.constant 0 : index
    %64 = vector.load %arg6[%c16_54, %c0_55] : memref<72x512xf32, #tpu.memory_space<vmem>>, vector<8x512xf32>
    tpu.vector_store %arg6[%c16_54, %c0_55], %63 {strides = array<i32>} : memref<72x512xf32, #tpu.memory_space<vmem>>, vector<8x512xf32>,
    %c4_i32_56 = arith.constant 4 : i32
    %65 = tpu.dynamic_rotate %52 by %c4_i32_56 dim 1 : vector<8x512xf32>, i32 -> vector<8x512xf32>
    %c24_57 = arith.constant 24 : index
    %c0_58 = arith.constant 0 : index
    %66 = vector.load %arg3[%c24_57, %c0_58] : memref<72x512xf32, #tpu.memory_space<vmem>>, vector<8x512xf32>
    %67 = arith.mulf %65, %66 : vector<8x512xf32>
    %c24_59 = arith.constant 24 : index
    %c0_60 = arith.constant 0 : index
    %68 = vector.load %arg6[%c24_59, %c0_60] : memref<72x512xf32, #tpu.memory_space<vmem>>, vector<8x512xf32>
    tpu.vector_store %arg6[%c24_59, %c0_60], %67 {strides = array<i32>} : memref<72x512xf32, #tpu.memory_space<vmem>>, vector<8x512xf32>,
    %c32_61 = arith.constant 32 : index
    %c0_62 = arith.constant 0 : index
    %69 = vector.load %arg6[%c32_61, %c0_62] : memref<72x512xf32, #tpu.memory_space<vmem>>, vector<8x512xf32>
    tpu.vector_store %arg6[%c32_61, %c0_62], %52 {strides = array<i32>} : memref<72x512xf32, #tpu.memory_space<vmem>>, vector<8x512xf32>,
    %c508_i32_63 = arith.constant 508 : i32
    %70 = tpu.dynamic_rotate %52 by %c508_i32_63 dim 1 : vector<8x512xf32>, i32 -> vector<8x512xf32>
    %c40_64 = arith.constant 40 : index
    %c0_65 = arith.constant 0 : index
    %71 = vector.load %arg3[%c40_64, %c0_65] : memref<72x512xf32, #tpu.memory_space<vmem>>, vector<8x512xf32>
    %72 = arith.mulf %70, %71 : vector<8x512xf32>
    %c40_66 = arith.constant 40 : index
    %c0_67 = arith.constant 0 : index
    %73 = vector.load %arg6[%c40_66, %c0_67] : memref<72x512xf32, #tpu.memory_space<vmem>>, vector<8x512xf32>
    tpu.vector_store %arg6[%c40_66, %c0_67], %72 {strides = array<i32>} : memref<72x512xf32, #tpu.memory_space<vmem>>, vector<8x512xf32>,
    %c452_i32_68 = arith.constant 452 : i32
    %74 = tpu.dynamic_rotate %52 by %c452_i32_68 dim 1 : vector<8x512xf32>, i32 -> vector<8x512xf32>
    %c48_69 = arith.constant 48 : index
    %c0_70 = arith.constant 0 : index
    %75 = vector.load %arg3[%c48_69, %c0_70] : memref<72x512xf32, #tpu.memory_space<vmem>>, vector<8x512xf32>
    %76 = arith.mulf %74, %75 : vector<8x512xf32>
    %c48_71 = arith.constant 48 : index
    %c0_72 = arith.constant 0 : index
    %77 = vector.load %arg6[%c48_71, %c0_72] : memref<72x512xf32, #tpu.memory_space<vmem>>, vector<8x512xf32>
    tpu.vector_store %arg6[%c48_71, %c0_72], %76 {strides = array<i32>} : memref<72x512xf32, #tpu.memory_space<vmem>>, vector<8x512xf32>,
    %c448_i32_73 = arith.constant 448 : i32
    %78 = tpu.dynamic_rotate %52 by %c448_i32_73 dim 1 : vector<8x512xf32>, i32 -> vector<8x512xf32>
    %c56_74 = arith.constant 56 : index
    %c0_75 = arith.constant 0 : index
    %79 = vector.load %arg3[%c56_74, %c0_75] : memref<72x512xf32, #tpu.memory_space<vmem>>, vector<8x512xf32>
    %80 = arith.mulf %78, %79 : vector<8x512xf32>
    %c56_76 = arith.constant 56 : index
    %c0_77 = arith.constant 0 : index
    %81 = vector.load %arg6[%c56_76, %c0_77] : memref<72x512xf32, #tpu.memory_space<vmem>>, vector<8x512xf32>
    tpu.vector_store %arg6[%c56_76, %c0_77], %80 {strides = array<i32>} : memref<72x512xf32, #tpu.memory_space<vmem>>, vector<8x512xf32>,
    %c444_i32_78 = arith.constant 444 : i32
    %82 = tpu.dynamic_rotate %52 by %c444_i32_78 dim 1 : vector<8x512xf32>, i32 -> vector<8x512xf32>
    %c64_79 = arith.constant 64 : index
    %c0_80 = arith.constant 0 : index
    %83 = vector.load %arg3[%c64_79, %c0_80] : memref<72x512xf32, #tpu.memory_space<vmem>>, vector<8x512xf32>
    %84 = arith.mulf %82, %83 : vector<8x512xf32>
    %c64_81 = arith.constant 64 : index
    %c0_82 = arith.constant 0 : index
    %85 = vector.load %arg6[%c64_81, %c0_82] : memref<72x512xf32, #tpu.memory_space<vmem>>, vector<8x512xf32>
    tpu.vector_store %arg6[%c64_81, %c0_82], %84 {strides = array<i32>} : memref<72x512xf32, #tpu.memory_space<vmem>>, vector<8x512xf32>,
    %c0_83 = arith.constant 0 : index
    %c0_84 = arith.constant 0 : index
    %86 = vector.load %arg6[%c0_83, %c0_84] : memref<72x512xf32, #tpu.memory_space<vmem>>, vector<72x512xf32>
    %cst_85 = arith.constant dense<0.000000e+00> : vector<8x512xf32>
    %87 = tpu.matmul %4, %86, %cst_85 {dimension_numbers = #tpu.dot_dimension_numbers<[1], [0], [0], [1], [0, 0, 1, 1], [], []>} : vector<8x72xf32>, vector<72x512xf32>, vector<8x512xf32> -> vector<8x512xf32>
    %88 = vector.broadcast %7 : vector<8x1xf32> to vector<8x512xf32>
    %89 = arith.addf %87, %88 : vector<8x512xf32>
    %cst_86 = arith.constant 0.000000e+00 : f32
    %90 = vector.broadcast %cst_86 : f32 to vector<8x512xf32>
    %91 = arith.maximumf %89, %90 : vector<8x512xf32>
    %92 = vector.broadcast %8 : vector<8x1xf32> to vector<8x512xf32>
    %93 = arith.mulf %92, %91 : vector<8x512xf32>
    %cst_87 = arith.constant dense<0.000000e+00> : vector<512xf32>
    %94 = vector.multi_reduction <add>, %93, %cst_87 [0] : vector<8x512xf32> to vector<512xf32>
    %95 = vector.shape_cast %94 : vector<512xf32> to vector<1x512xf32>
    %c0_88 = arith.constant 0 : index
    %96 = memref.load %arg4[%c0_88] : memref<1xf32, #tpu.memory_space<smem>>
    %97 = vector.broadcast %96 : f32 to vector<1x512xf32>
    %98 = arith.addf %95, %97 : vector<1x512xf32>
    %99 = vector.shape_cast %98 : vector<1x512xf32> to vector<1x1x512xf32>
    %c0_89 = arith.constant 0 : index
    %c0_90 = arith.constant 0 : index
    %c0_91 = arith.constant 0 : index
    %100 = vector.load %arg5[%c0_89, %c0_90, %c0_91] : memref<1x1x512xf32, #tpu.memory_space<vmem>>, vector<1x1x512xf32>
    tpu.vector_store %arg5[%c0_89, %c0_90, %c0_91], %99 {strides = array<i32>} : memref<1x1x512xf32, #tpu.memory_space<vmem>>, vector<1x1x512xf32>,
    return
  }
  func.func @transform_0(%arg0: i32) -> (i32, i32, i32) {
    %c0_i32 = arith.constant 0 : i32
    %c0_i32_0 = arith.constant 0 : i32
    %c0_i32_1 = arith.constant 0 : i32
    return %arg0, %c0_i32, %c0_i32_0 : i32, i32, i32
  }
  func.func @transform_1(%arg0: i32) -> (i32, i32) {
    %c0_i32 = arith.constant 0 : i32
    %c0_i32_0 = arith.constant 0 : i32
    %c0_i32_1 = arith.constant 0 : i32
    return %c0_i32, %c0_i32_0 : i32, i32
  }
  func.func @transform_2(%arg0: i32) -> (i32, i32) {
    %c0_i32 = arith.constant 0 : i32
    %c0_i32_0 = arith.constant 0 : i32
    %c0_i32_1 = arith.constant 0 : i32
    return %c0_i32, %c0_i32_0 : i32, i32
  }
  func.func @transform_3(%arg0: i32) -> i32 {
    %c0_i32 = arith.constant 0 : i32
    %c0_i32_0 = arith.constant 0 : i32
    return %c0_i32 : i32
  }
  func.func @transform_4(%arg0: i32) -> (i32, i32, i32) {
    %c0_i32 = arith.constant 0 : i32
    %c0_i32_0 = arith.constant 0 : i32
    %c0_i32_1 = arith.constant 0 : i32
    return %arg0, %c0_i32, %c0_i32_0 : i32, i32, i32
  }
}

</mosaic_0001>

<llo_original>
// kernel: tpu_custom_call.1
$region0: #{tpu_custom_call.1}
  #allocation0 [shape = 'u32[]', space=smem, size = 0x4, offset = 0x4, fixed_abs, tag = 'smem constant byte address 0x4 - core index']
  #allocation1 [shape = 'u32[72,128]{1,0:T(1,128)}', space=vmem, size = 0x9000, scoped, tag = 'internal scratch']
  #allocation2 [shape = 'f32[72,512]{1,0:T(8,128)}', space=vmem, size = 0x24000, scoped, tag = 'scratch operand']
  #allocation3 [shape = 'f32[1]{0:T(128)S(6)}', space=smem, size = 0x200, scoped, tag = 'scoped memory for tpu_custom_call.1']
  %s0 = inlined_call_operand.hbm [shape: f32[2,64,512], index: 0, kind: input, shape index: {}]
  %s1 = inlined_call_operand.hbm [shape: f32[8,512], index: 1, kind: input, shape index: {}]
  %s2 = inlined_call_operand.hbm [shape: f32[72,512], index: 2, kind: input, shape index: {}]
  %s3 = inlined_call_operand.<no memory space> [shape: f32[1], index: 3, kind: input, shape index: {}]
  %s4 = inlined_call_operand.hbm [shape: f32[2,1,512], index: 4, kind: output, shape index: {}]
  %s5 = sld [smem:[#allocation0]]
  $region61: #{tpu_custom_call.1} parent=0
    _
  %s7 = ssub.s32 1, %s5
  %s8 = scalar_select 0, %s7, %s5
  %9 = sst [smem:[#allocation3]] %s3
  $region1: #{tpu_custom_call.1} parent=0
    #allocation4 [shape = 'u8[262144]{0}', space=vmem, size = 0x40000, scoped, tag = 'input window, operand 0']
    #allocation5 [shape = 's32[2]{0}', space=sflag, size = 0x8, scoped, tag = 'scoped memory for tpu_custom_call.1']
    #allocation6 [shape = 's32[2]{0}', space=sflag, size = 0x8, scoped, tag = 'scoped memory for tpu_custom_call.1']
    #allocation7 [shape = 'u8[16384]{0}', space=vmem, size = 0x4000, scoped, tag = 'input window, operand 1, single buffered']
    #allocation8 [shape = 's32[1]{0}', space=sflag, size = 0x4, scoped, tag = 'scoped memory for tpu_custom_call.1']
    #allocation9 [shape = 'u8[147456]{0}', space=vmem, size = 0x24000, scoped, tag = 'input window, operand 2, single buffered']
    #allocation10 [shape = 'u8[4096]{0}', space=vmem, size = 0x1000, scoped, tag = 'output window, operand 0']
    %10 = vsyncpa [#allocation5], 0
    %s11 = scalar_lea.sflag [#allocation5], 1
    %12 = vsyncpa %s11, 0
    %13 = vsyncpa [#allocation8], 0
    %14 = vsyncpa [#allocation6], 0
    %s15 = scalar_lea.sflag [#allocation6], 1
    %16 = vsyncpa %s15, 0
    loop: start=0, step=1, limit=4
    $region2: #{tpu_custom_call.1} parent=1 // loop_pre_header
      _
    $region3: #{tpu_custom_call.1} parent=1 // loop_header
      %s18 = sphi 0, %s22
      %p19 = scmp.ge.s32.totalorder %s18, 4
      %s28 = sphi 0, %s30
      %s31 = sphi 0, %s28
      %s32 = sphi 0, %s31
      %s48 = sphi 0, %s32
      %s52 = sphi 0, %s52
      %s54 = sphi 0, %s52
      %s55 = sphi 0, %s54
      %s69 = sphi 0, %s55
      %s73 = sphi 0, %s73
      %s75 = sphi 0, %s73
      %s76 = sphi 0, %s75
      %s90 = sphi 0, %s76
      %s94 = sphi 0, %s94
      %s96 = sphi 0, %s94
      %s97 = sphi 0, %s96
      %s111 = sphi 0, %s97
      %s117 = sphi 0, %s119
      %s120 = sphi 0, %s117
      %s121 = sphi 0, %s120
      %s137 = sphi 0, %s121
    $region4: #{tpu_custom_call.1} parent=1 // loop_header_branch
      %21 = sbr.rel (%p19) target = $region8
    $region5: #{tpu_custom_call.1} parent=1 // loop_body
      %s23 = ssub.s32 %s18, 1
      %s24 = ssub.s32 %s18, 2
      %s25 = sadd.s32 %s18, 1
      %s26 = ssub.s32 %s18, %s25
      %p27 = scmp.eq.s32.totalorder %s26, 0
      %s29 = sadd.s32 %s28, 1
      %s30 = scalar_select %p27, %s28, %s29
      %p33 = pneg %p27
      %p34 = scmp.eq.s32.totalorder %s18, 1
      %p35 = por %p33, %p34
      %p36 = scmp.ne.s32.totalorder %s28, %s31
      %p37 = scmp.eq.s32.totalorder %s18, 0
      %p38 = por %p36, %p37
      %p39 = scmp.ne.s32.totalorder %s28, %s31
      %p40 = scmp.eq.s32.totalorder %s23, 1
      %p41 = por %p39, %p40
      %p42 = scmp.ne.s32.totalorder %s31, %s32
      %p43 = scmp.eq.s32.totalorder %s23, 0
      %p44 = por %p42, %p43
      %p45 = scmp.ne.s32.totalorder %s31, %s32
      %p46 = scmp.eq.s32.totalorder %s24, 1
      %p47 = por %p45, %p46
      %p49 = scmp.ne.s32.totalorder %s32, %s48
      %p50 = scmp.eq.s32.totalorder %s24, 0
      %p51 = por %p49, %p50
      %s53 = sadd.s32 %s52, 1
      %p56 = scmp.eq.s32.totalorder %s18, 1
      %p57 = scmp.ne.s32.totalorder %s52, %s54
      %p58 = scmp.eq.s32.totalorder %s18, 0
      %p59 = por %p57, %p58
      %p60 = scmp.ne.s32.totalorder %s52, %s54
      %p61 = scmp.eq.s32.totalorder %s23, 1
      %p62 = por %p60, %p61
      %p63 = scmp.ne.s32.totalorder %s54, %s55
      %p64 = scmp.eq.s32.totalorder %s23, 0
      %p65 = por %p63, %p64
      %p66 = scmp.ne.s32.totalorder %s54, %s55
      %p67 = scmp.eq.s32.totalorder %s24, 1
      %p68 = por %p66, %p67
      %p70 = scmp.ne.s32.totalorder %s55, %s69
      %p71 = scmp.eq.s32.totalorder %s24, 0
      %p72 = por %p70, %p71
      %s74 = sadd.s32 %s73, 1
      %p77 = scmp.eq.s32.totalorder %s18, 1
      %p78 = scmp.ne.s32.totalorder %s73, %s75
      %p79 = scmp.eq.s32.totalorder %s18, 0
      %p80 = por %p78, %p79
      %p81 = scmp.ne.s32.totalorder %s73, %s75
      %p82 = scmp.eq.s32.totalorder %s23, 1
      %p83 = por %p81, %p82
      %p84 = scmp.ne.s32.totalorder %s75, %s76
      %p85 = scmp.eq.s32.totalorder %s23, 0
      %p86 = por %p84, %p85
      %p87 = scmp.ne.s32.totalorder %s75, %s76
      %p88 = scmp.eq.s32.totalorder %s24, 1
      %p89 = por %p87, %p88
      %p91 = scmp.ne.s32.totalorder %s76, %s90
      %p92 = scmp.eq.s32.totalorder %s24, 0
      %p93 = por %p91, %p92
      %s95 = sadd.s32 %s94, 1
      %p98 = scmp.eq.s32.totalorder %s18, 1
      %p99 = scmp.ne.s32.totalorder %s94, %s96
      %p100 = scmp.eq.s32.totalorder %s18, 0
      %p101 = por %p99, %p100
      %p102 = scmp.ne.s32.totalorder %s94, %s96
      %p103 = scmp.eq.s32.totalorder %s23, 1
      %p104 = por %p102, %p103
      %p105 = scmp.ne.s32.totalorder %s96, %s97
      %p106 = scmp.eq.s32.totalorder %s23, 0
      %p107 = por %p105, %p106
      %p108 = scmp.ne.s32.totalorder %s96, %s97
      %p109 = scmp.eq.s32.totalorder %s24, 1
      %p110 = por %p108, %p109
      %p112 = scmp.ne.s32.totalorder %s97, %s111
      %p113 = scmp.eq.s32.totalorder %s24, 0
      %p114 = por %p112, %p113
      %s115 = ssub.s32 %s18, %s25
      %p116 = scmp.eq.s32.totalorder %s115, 0
      %s118 = sadd.s32 %s117, 1
      %s119 = scalar_select %p116, %s117, %s118
      %p122 = pneg %p116
      %p123 = scmp.eq.s32.totalorder %s18, 1
      %p124 = por %p122, %p123
      %p125 = scmp.ne.s32.totalorder %s117, %s120
      %p126 = scmp.eq.s32.totalorder %s18, 0
      %p127 = por %p125, %p126
      %p128 = scmp.ne.s32.totalorder %s117, %s120
      %p129 = scmp.eq.s32.totalorder %s23, 1
      %p130 = por %p128, %p129
      %p131 = scmp.ne.s32.totalorder %s120, %s121
      %p132 = scmp.eq.s32.totalorder %s23, 0
      %p133 = por %p131, %p132
      %p134 = scmp.ne.s32.totalorder %s120, %s121
      %p135 = scmp.eq.s32.totalorder %s24, 1
      %p136 = por %p134, %p135
      %p138 = scmp.ne.s32.totalorder %s121, %s137
      %p139 = scmp.eq.s32.totalorder %s24, 0
      %p140 = por %p138, %p139
      %p141 = scmp.le.s32.totalorder 1, %s18
      %p142 = scmp.lt.s32.totalorder %s18, 3
      %p143 = pnand %p141, %p142
      %p144 = pneg %p143
      // Predicated region
      $region9: #{tpu_custom_call.1} parent=5 // pred_check
        _
      $region10: #{tpu_custom_call.1} parent=5 // pred_check_branch
        %146 = sbr.rel (%p143) target = $region12
      $region11: #{tpu_custom_call.1} parent=5 // pred_region
        %s147 = ssub.s32 %s18, 1
        // Predicated region
        $region13: #{tpu_custom_call.1} parent=11 // pred_check
          %p148 = pneg %p65
        $region14: #{tpu_custom_call.1} parent=11 // pred_check_branch
          %150 = sbr.rel (%p148) target = $region16
        $region15: #{tpu_custom_call.1} parent=11 // pred_region
          %152 = vsyncadd [#allocation8], 0
          %s154 = sshll.u32 %s1, 4
          %s155 = int_to_ptr.hbm [resolvable:$true] %s154
          %s156 = sshll.u32 [#allocation7], 4
          %s157 = int_to_ptr.vmem [resolvable:$true] %s156
          %159 = dma.hbm_to_vmem [thread:$0]  %s155, 512, %s157, [#allocation8]
        $region16: #{tpu_custom_call.1} parent=11 // pred_fallthru
          _
        // Predicated region
        $region17: #{tpu_custom_call.1} parent=11 // pred_check
          %p160 = pneg %p86
        $region18: #{tpu_custom_call.1} parent=11 // pred_check_branch
          %162 = sbr.rel (%p160) target = $region20
        $region19: #{tpu_custom_call.1} parent=11 // pred_region
          %164 = vsyncadd [#allocation8], 0
          %s165 = sshll.u32 %s2, 4
          %s166 = int_to_ptr.hbm [resolvable:$true] %s165
          %s167 = sshll.u32 [#allocation9], 4
          %s168 = int_to_ptr.vmem [resolvable:$true] %s167
          %173 = dma.hbm_to_vmem [thread:$0]  %s166, 4608, %s168, [#allocation8], 512, 512, 32
        $region20: #{tpu_custom_call.1} parent=11 // pred_fallthru
          _
        // Predicated region
        $region21: #{tpu_custom_call.1} parent=11 // pred_check
          %p174 = pneg %p107
        $region22: #{tpu_custom_call.1} parent=11 // pred_check_branch
          %176 = sbr.rel (%p174) target = $region24
        $region23: #{tpu_custom_call.1} parent=11 // pred_region
          _
        $region24: #{tpu_custom_call.1} parent=11 // pred_fallthru
          _
      $region12: #{tpu_custom_call.1} parent=5 // pred_fallthru
        _
      %p177 = scmp.lt.s32.totalorder %s18, 2
      // Predicated region
      $region25: #{tpu_custom_call.1} parent=5 // pred_check
        %p178 = pneg %p177
      $region26: #{tpu_custom_call.1} parent=5 // pred_check_branch
        %180 = sbr.rel (%p178) target = $region28
      $region27: #{tpu_custom_call.1} parent=5 // pred_region
        // Predicated region
        $region29: #{tpu_custom_call.1} parent=27 // pred_check
          %p181 = pneg %p38
        $region30: #{tpu_custom_call.1} parent=27 // pred_check_branch
          %183 = sbr.rel (%p181) target = $region32
        $region31: #{tpu_custom_call.1} parent=27 // pred_region
          %s184 = sand.u32 %s28, 1
          %s185 = scalar_lea.sflag [#allocation5], %s184
          %s186 = sand.u32 %s28, 1
          %s187 = smul.addr %s186, 256
          %s188 = scalar_lea.vmem [#allocation4], %s187
          %190 = vsyncadd %s185, 0
          %s191 = smul.addr %s18, 32
          %s192 = smul.addr %s191, 8
          %s193 = scalar_lea.hbm %s0, %s192
          %s194 = sshll.u32 %s193, 4
          %s195 = int_to_ptr.hbm [resolvable:$true] %s194
          %s196 = sshll.u32 %s188, 4
          %s197 = int_to_ptr.vmem [resolvable:$true] %s196
          %202 = dma.hbm_to_vmem [thread:$0]  %s195, 4096, %s197, %s185, 512, 512, 32
        $region32: #{tpu_custom_call.1} parent=27 // pred_fallthru
          _
      $region28: #{tpu_custom_call.1} parent=5 // pred_fallthru
        _
      %p203 = scmp.le.s32.totalorder 1, %s18
      %p204 = scmp.lt.s32.totalorder %s18, 3
      %p205 = pnand %p203, %p204
      %p206 = pneg %p205
      // Predicated region
      $region33: #{tpu_custom_call.1} parent=5 // pred_check
        _
      $region34: #{tpu_custom_call.1} parent=5 // pred_check_branch
        %208 = sbr.rel (%p205) target = $region36
      $region35: #{tpu_custom_call.1} parent=5 // pred_region
        %s209 = ssub.s32 %s18, 1
        %s210 = sand.u32 %s31, 1
        %s211 = scalar_lea.sflag [#allocation5], %s210
        %s212 = sand.u32 %s31, 1
        %s213 = smul.addr %s212, 256
        %s214 = scalar_lea.vmem [#allocation4], %s213
        // Predicated region
        $region37: #{tpu_custom_call.1} parent=35 // pred_check
          %p215 = pneg %p44
        $region38: #{tpu_custom_call.1} parent=35 // pred_check_branch
          %217 = sbr.rel (%p215) target = $region40
        $region39: #{tpu_custom_call.1} parent=35 // pred_region
          %219 = dma.done %s211, 4096
        $region40: #{tpu_custom_call.1} parent=35 // pred_fallthru
          _
        // Predicated region
        $region41: #{tpu_custom_call.1} parent=35 // pred_check
          %p220 = pneg %p65
        $region42: #{tpu_custom_call.1} parent=35 // pred_check_branch
          %222 = sbr.rel (%p220) target = $region44
        $region43: #{tpu_custom_call.1} parent=35 // pred_region
          %224 = dma.done [#allocation8], 512
        $region44: #{tpu_custom_call.1} parent=35 // pred_fallthru
          _
        // Predicated region
        $region45: #{tpu_custom_call.1} parent=35 // pred_check
          %p225 = pneg %p86
        $region46: #{tpu_custom_call.1} parent=35 // pred_check_branch
          %227 = sbr.rel (%p225) target = $region48
        $region47: #{tpu_custom_call.1} parent=35 // pred_region
          %229 = dma.done [#allocation8], 4608
        $region48: #{tpu_custom_call.1} parent=35 // pred_fallthru
          _
        %s230 = sand.u32 %s31, 1
        %s231 = scalar_lea.sflag [#allocation5], %s230
        %s232 = sand.u32 %s31, 1
        %s233 = smul.addr %s232, 256
        %s234 = scalar_lea.vmem [#allocation4], %s233
        %p235 = pneg %p44
        %p236 = pneg %p41
        %p237 = pneg %p65
        %p238 = pneg %p62
        %p239 = pneg %p86
        %p240 = pneg %p83
        %p241 = pneg %p107
        %p242 = pneg %p104
        %p243 = pneg %p133
        %p244 = pneg %p130
        %s245 = sand.u32 %s120, 1
        %s246 = scalar_lea.sflag [#allocation6], %s245
        %s247 = sand.u32 %s120, 1
        %s248 = smul.addr %s247, 4
        %s249 = scalar_lea.vmem [#allocation10], %s248
        %v250 = vld [vmem:[%s214] sm:$0xff]
        %v251 = vld [vmem:[%s214 + $0x8] sm:$0xff]
        %v252 = vld [vmem:[%s214 + $0x10] sm:$0xff]
        %v253 = vld [vmem:[%s214 + $0x18] sm:$0xff]
        %v254 = vld [vmem:[%s214 + $0x20] sm:$0xff]
        %v255 = vld [vmem:[%s214 + $0x28] sm:$0xff]
        %v256 = vld [vmem:[%s214 + $0x30] sm:$0xff]
        %v257 = vld [vmem:[%s214 + $0x38] sm:$0xff]
        %v258 = vld [vmem:[%s214 + $0x40] sm:$0xff]
        %v259 = vld [vmem:[%s214 + $0x48] sm:$0xff]
        %v260 = vld [vmem:[%s214 + $0x50] sm:$0xff]
        %v261 = vld [vmem:[%s214 + $0x58] sm:$0xff]
        %v262 = vld [vmem:[%s214 + $0x60] sm:$0xff]
        %v263 = vld [vmem:[%s214 + $0x68] sm:$0xff]
        %v264 = vld [vmem:[%s214 + $0x70] sm:$0xff]
        %v265 = vld [vmem:[%s214 + $0x78] sm:$0xff]
        %v266 = vld [vmem:[%s214 + $0x80] sm:$0xff]
        %v267 = vld [vmem:[%s214 + $0x88] sm:$0xff]
        %v268 = vld [vmem:[%s214 + $0x90] sm:$0xff]
        %v269 = vld [vmem:[%s214 + $0x98] sm:$0xff]
        %v270 = vld [vmem:[%s214 + $0xa0] sm:$0xff]
        %v271 = vld [vmem:[%s214 + $0xa8] sm:$0xff]
        %v272 = vld [vmem:[%s214 + $0xb0] sm:$0xff]
        %v273 = vld [vmem:[%s214 + $0xb8] sm:$0xff]
        %v274 = vld [vmem:[%s214 + $0xc0] sm:$0xff]
        %v275 = vld [vmem:[%s214 + $0xc8] sm:$0xff]
        %v276 = vld [vmem:[%s214 + $0xd0] sm:$0xff]
        %v277 = vld [vmem:[%s214 + $0xd8] sm:$0xff]
        %v278 = vld [vmem:[%s214 + $0xe0] sm:$0xff]
        %v279 = vld [vmem:[%s214 + $0xe8] sm:$0xff]
        %v280 = vld [vmem:[%s214 + $0xf0] sm:$0xff]
        %v281 = vld [vmem:[%s214 + $0xf8] sm:$0xff]
        %v282 = vld [vmem:[#allocation7] sm:$0xff]
        %v283 = vld [vmem:[#allocation7 + $0x8] sm:$0xff]
        %v284 = vld [vmem:[#allocation7 + $0x10] sm:$0xff]
        %v285 = vld [vmem:[#allocation7 + $0x18] sm:$0xff]
        %287 = vset.pattern.permute.xlu0 0
        %288 = vperm.xlu0 %287, %v285
        %v289 = vpop.permute.xlu0 %288
        %vm291 = vcmask 523264
        %v293 = vsel %vm291, %v282, 0
        %295 = vmatpush.msra.mxu0 0.0
        %296 = vmatpush.msra.mxu0 0.0
        %297 = vmatpush.msra.mxu0 0.0
        %298 = vmatpush.msra.mxu0 0.0
        %299 = vmatpush.msra.mxu0 0.0
        %300 = vmatpush.msra.mxu0 0.0
        %301 = vmatpush.msra.mxu0 0.0
        %302 = vmatpush.msra.mxu0 0.0
        %303 = vmatpush.msra.mxu0 %v278
        %304 = vmatpush.msra.mxu0 %v274
        %305 = vmatpush.msra.mxu0 %v270
        %306 = vmatpush.msra.mxu0 %v266
        %307 = vmatpush.msra.mxu0 %v262
        %308 = vmatpush.msra.mxu0 %v258
        %309 = vmatpush.msra.mxu0 %v254
        %310 = vmatpush.msra.mxu0 %v250
        %311 = vmatmul.f32.gmra.mxu0 %v293
        %v312 = vpop.f32.mrf.mxu0
        %v313 = vadd.f32 %v289, %v312
        %314 = vdwg.mxu0
        %315 = vmatpush.msra.mxu0 0.0
        %316 = vmatpush.msra.mxu0 0.0
        %317 = vmatpush.msra.mxu0 0.0
        %318 = vmatpush.msra.mxu0 0.0
        %319 = vmatpush.msra.mxu0 0.0
        %320 = vmatpush.msra.mxu0 0.0
        %321 = vmatpush.msra.mxu0 0.0
        %322 = vmatpush.msra.mxu0 0.0
        %323 = vmatpush.msra.mxu0 %v279
        %324 = vmatpush.msra.mxu0 %v275
        %325 = vmatpush.msra.mxu0 %v271
        %326 = vmatpush.msra.mxu0 %v267
        %327 = vmatpush.msra.mxu0 %v263
        %328 = vmatpush.msra.mxu0 %v259
        %329 = vmatpush.msra.mxu0 %v255
        %330 = vmatpush.msra.mxu0 %v251
        %331 = vmatmul.f32.gmra.mxu0 %v293
        %v332 = vpop.f32.mrf.mxu0
        %v333 = vadd.f32 %v289, %v332
        %334 = vdwg.mxu0
        %335 = vmatpush.msra.mxu0 0.0
        %336 = vmatpush.msra.mxu0 0.0
        %337 = vmatpush.msra.mxu0 0.0
        %338 = vmatpush.msra.mxu0 0.0
        %339 = vmatpush.msra.mxu0 0.0
        %340 = vmatpush.msra.mxu0 0.0
        %341 = vmatpush.msra.mxu0 0.0
        %342 = vmatpush.msra.mxu0 0.0
        %343 = vmatpush.msra.mxu0 %v280
        %344 = vmatpush.msra.mxu0 %v276
        %345 = vmatpush.msra.mxu0 %v272
        %346 = vmatpush.msra.mxu0 %v268
        %347 = vmatpush.msra.mxu0 %v264
        %348 = vmatpush.msra.mxu0 %v260
        %349 = vmatpush.msra.mxu0 %v256
        %350 = vmatpush.msra.mxu0 %v252
        %351 = vmatmul.f32.gmra.mxu0 %v293
        %v352 = vpop.f32.mrf.mxu0
        %v353 = vadd.f32 %v289, %v352
        %354 = vdwg.mxu0
        %355 = vmatpush.msra.mxu0 0.0
        %356 = vmatpush.msra.mxu0 0.0
        %357 = vmatpush.msra.mxu0 0.0
        %358 = vmatpush.msra.mxu0 0.0
        %359 = vmatpush.msra.mxu0 0.0
        %360 = vmatpush.msra.mxu0 0.0
        %361 = vmatpush.msra.mxu0 0.0
        %362 = vmatpush.msra.mxu0 0.0
        %363 = vmatpush.msra.mxu0 %v281
        %364 = vmatpush.msra.mxu0 %v277
        %365 = vmatpush.msra.mxu0 %v273
        %366 = vmatpush.msra.mxu0 %v269
        %367 = vmatpush.msra.mxu0 %v265
        %368 = vmatpush.msra.mxu0 %v261
        %369 = vmatpush.msra.mxu0 %v257
        %370 = vmatpush.msra.mxu0 %v253
        %371 = vmatmul.f32.gmra.mxu0 %v293
        %v372 = vpop.f32.mrf.mxu0
        %v373 = vadd.f32 %v289, %v372
        %374 = vdwg.mxu0
        %v375 = vmax.f32 %v313, 0.0
        %v376 = vmax.f32 %v333, 0.0
        %v377 = vmax.f32 %v353, 0.0
        %v378 = vmax.f32 %v373, 0.0
        %379 = vrot.lane.b32.xlu0 %v375, 68
        %v380 = vpop.permute.xlu0 %379
        %381 = vrot.lane.b32.xlu0 %v376, 68
        %v382 = vpop.permute.xlu0 %381
        %383 = vrot.lane.b32.xlu0 %v377, 68
        %v384 = vpop.permute.xlu0 %383
        %385 = vrot.lane.b32.xlu0 %v378, 68
        %v386 = vpop.permute.xlu0 %385
        %v387 = vlaneseq
        %v388 = vand.u32 %v387, 127
        %vm389 = vcmp.lt.s32.totalorder %v388, 68
        %v390 = vsel %vm389, %v384, %v386
        %v391 = vsel %vm389, %v382, %v384
        %v392 = vsel %vm389, %v380, %v382
        %v393 = vsel %vm389, %v386, %v380
        %v394 = vld [vmem:[#allocation9] sm:$0xff]
        %v395 = vld [vmem:[#allocation9 + $0x8] sm:$0xff]
        %v396 = vld [vmem:[#allocation9 + $0x10] sm:$0xff]
        %v397 = vld [vmem:[#allocation9 + $0x18] sm:$0xff]
        %v398 = vmul.f32 %v393, %v394
        %v399 = vmul.f32 %v392, %v395
        %v400 = vmul.f32 %v391, %v396
        %v401 = vmul.f32 %v390, %v397
        %402 = vst [vmem:[#allocation2] sm:$0xff] %v398
        %403 = vst [vmem:[#allocation2 + $0x8] sm:$0xff] %v399
        %404 = vst [vmem:[#allocation2 + $0x10] sm:$0xff] %v400
        %405 = vst [vmem:[#allocation2 + $0x18] sm:$0xff] %v401
        %406 = vrot.lane.b32.xlu0 %v375, 64
        %v407 = vpop.permute.xlu0 %406
        %408 = vrot.lane.b32.xlu0 %v376, 64
        %v409 = vpop.permute.xlu0 %408
        %410 = vrot.lane.b32.xlu0 %v377, 64
        %v411 = vpop.permute.xlu0 %410
        %412 = vrot.lane.b32.xlu0 %v378, 64
        %v413 = vpop.permute.xlu0 %412
        %vm414 = vcmp.lt.s32.totalorder %v388, 64
        %v415 = vsel %vm414, %v411, %v413
        %v416 = vsel %vm414, %v409, %v411
        %v417 = vsel %vm414, %v407, %v409
        %v418 = vsel %vm414, %v413, %v407
        %v419 = vld [vmem:[#allocation9 + $0x20] sm:$0xff]
        %v420 = vld [vmem:[#allocation9 + $0x28] sm:$0xff]
        %v421 = vld [vmem:[#allocation9 + $0x30] sm:$0xff]
        %v422 = vld [vmem:[#allocation9 + $0x38] sm:$0xff]
        %v423 = vmul.f32 %v418, %v419
        %v424 = vmul.f32 %v417, %v420
        %v425 = vmul.f32 %v416, %v421
        %v426 = vmul.f32 %v415, %v422
        %427 = vst [vmem:[#allocation2 + $0x20] sm:$0xff] %v423
        %428 = vst [vmem:[#allocation2 + $0x28] sm:$0xff] %v424
        %429 = vst [vmem:[#allocation2 + $0x30] sm:$0xff] %v425
        %430 = vst [vmem:[#allocation2 + $0x38] sm:$0xff] %v426
        %431 = vrot.lane.b32.xlu0 %v375, 60
        %v432 = vpop.permute.xlu0 %431
        %433 = vrot.lane.b32.xlu0 %v376, 60
        %v434 = vpop.permute.xlu0 %433
        %435 = vrot.lane.b32.xlu0 %v377, 60
        %v436 = vpop.permute.xlu0 %435
        %437 = vrot.lane.b32.xlu0 %v378, 60
        %v438 = vpop.permute.xlu0 %437
        %vm439 = vcmp.lt.s32.totalorder %v388, 60
        %v440 = vsel %vm439, %v436, %v438
        %v441 = vsel %vm439, %v434, %v436
        %v442 = vsel %vm439, %v432, %v434
        %v443 = vsel %vm439, %v438, %v432
        %v444 = vld [vmem:[#allocation9 + $0x40] sm:$0xff]
        %v445 = vld [vmem:[#allocation9 + $0x48] sm:$0xff]
        %v446 = vld [vmem:[#allocation9 + $0x50] sm:$0xff]
        %v447 = vld [vmem:[#allocation9 + $0x58] sm:$0xff]
        %v448 = vmul.f32 %v443, %v444
        %v449 = vmul.f32 %v442, %v445
        %v450 = vmul.f32 %v441, %v446
        %v451 = vmul.f32 %v440, %v447
        %452 = vst [vmem:[#allocation2 + $0x40] sm:$0xff] %v448
        %453 = vst [vmem:[#allocation2 + $0x48] sm:$0xff] %v449
        %454 = vst [vmem:[#allocation2 + $0x50] sm:$0xff] %v450
        %455 = vst [vmem:[#allocation2 + $0x58] sm:$0xff] %v451
        %456 = vrot.lane.b32.xlu0 %v375, 4
        %v457 = vpop.permute.xlu0 %456
        %458 = vrot.lane.b32.xlu0 %v376, 4
        %v459 = vpop.permute.xlu0 %458
        %460 = vrot.lane.b32.xlu0 %v377, 4
        %v461 = vpop.permute.xlu0 %460
        %462 = vrot.lane.b32.xlu0 %v378, 4
        %v463 = vpop.permute.xlu0 %462
        %vm464 = vcmp.lt.s32.totalorder %v388, 4
        %v465 = vsel %vm464, %v461, %v463
        %v466 = vsel %vm464, %v459, %v461
        %v467 = vsel %vm464, %v457, %v459
        %v468 = vsel %vm464, %v463, %v457
        %v469 = vld [vmem:[#allocation9 + $0x60] sm:$0xff]
        %v470 = vld [vmem:[#allocation9 + $0x68] sm:$0xff]
        %v471 = vld [vmem:[#allocation9 + $0x70] sm:$0xff]
        %v472 = vld [vmem:[#allocation9 + $0x78] sm:$0xff]
        %v473 = vmul.f32 %v468, %v469
        %v474 = vmul.f32 %v467, %v470
        %v475 = vmul.f32 %v466, %v471
        %v476 = vmul.f32 %v465, %v472
        %477 = vst [vmem:[#allocation2 + $0x60] sm:$0xff] %v473
        %478 = vst [vmem:[#allocation2 + $0x68] sm:$0xff] %v474
        %479 = vst [vmem:[#allocation2 + $0x70] sm:$0xff] %v475
        %480 = vst [vmem:[#allocation2 + $0x78] sm:$0xff] %v476
        %481 = vst [vmem:[#allocation2 + $0x80] sm:$0xff] %v375
        %482 = vst [vmem:[#allocation2 + $0x88] sm:$0xff] %v376
        %483 = vst [vmem:[#allocation2 + $0x90] sm:$0xff] %v377
        %484 = vst [vmem:[#allocation2 + $0x98] sm:$0xff] %v378
        %485 = vrot.lane.b32.xlu0 %v375, 124
        %v486 = vpop.permute.xlu0 %485
        %487 = vrot.lane.b32.xlu0 %v376, 124
        %v488 = vpop.permute.xlu0 %487
        %489 = vrot.lane.b32.xlu0 %v377, 124
        %v490 = vpop.permute.xlu0 %489
        %491 = vrot.lane.b32.xlu0 %v378, 124
        %v492 = vpop.permute.xlu0 %491
        %vm493 = vcmp.lt.s32.totalorder %v388, 124
        %v494 = vsel %vm493, %v490, %v492
        %v495 = vsel %vm493, %v488, %v490
        %v496 = vsel %vm493, %v486, %v488
        %v497 = vsel %vm493, %v492, %v486
        %v498 = vld [vmem:[#allocation9 + $0xa0] sm:$0xff]
        %v499 = vld [vmem:[#allocation9 + $0xa8] sm:$0xff]
        %v500 = vld [vmem:[#allocation9 + $0xb0] sm:$0xff]
        %v501 = vld [vmem:[#allocation9 + $0xb8] sm:$0xff]
        %v502 = vmul.f32 %v496, %v498
        %v503 = vmul.f32 %v495, %v499
        %v504 = vmul.f32 %v494, %v500
        %v505 = vmul.f32 %v497, %v501
        %506 = vst [vmem:[#allocation2 + $0xa0] sm:$0xff] %v502
        %507 = vst [vmem:[#allocation2 + $0xa8] sm:$0xff] %v503
        %508 = vst [vmem:[#allocation2 + $0xb0] sm:$0xff] %v504
        %509 = vst [vmem:[#allocation2 + $0xb8] sm:$0xff] %v505
        %v510 = vld [vmem:[#allocation9 + $0xc0] sm:$0xff]
        %v511 = vld [vmem:[#allocation9 + $0xc8] sm:$0xff]
        %v512 = vld [vmem:[#allocation9 + $0xd0] sm:$0xff]
        %v513 = vld [vmem:[#allocation9 + $0xd8] sm:$0xff]
        %v514 = vmul.f32 %v392, %v510
        %v515 = vmul.f32 %v391, %v511
        %v516 = vmul.f32 %v390, %v512
        %v517 = vmul.f32 %v393, %v513
        %518 = vst [vmem:[#allocation2 + $0xc0] sm:$0xff] %v514
        %519 = vst [vmem:[#allocation2 + $0xc8] sm:$0xff] %v515
        %520 = vst [vmem:[#allocation2 + $0xd0] sm:$0xff] %v516
        %521 = vst [vmem:[#allocation2 + $0xd8] sm:$0xff] %v517
        %v522 = vld [vmem:[#allocation9 + $0xe0] sm:$0xff]
        %v523 = vld [vmem:[#allocation9 + $0xe8] sm:$0xff]
        %v524 = vld [vmem:[#allocation9 + $0xf0] sm:$0xff]
        %v525 = vld [vmem:[#allocation9 + $0xf8] sm:$0xff]
        %v526 = vmul.f32 %v417, %v522
        %v527 = vmul.f32 %v416, %v523
        %v528 = vmul.f32 %v415, %v524
        %v529 = vmul.f32 %v418, %v525
        %530 = vst [vmem:[#allocation2 + $0xe0] sm:$0xff] %v526
        %531 = vst [vmem:[#allocation2 + $0xe8] sm:$0xff] %v527
        %532 = vst [vmem:[#allocation2 + $0xf0] sm:$0xff] %v528
        %533 = vst [vmem:[#allocation2 + $0xf8] sm:$0xff] %v529
        %v534 = vld [vmem:[#allocation9 + $0x100] sm:$0xff]
        %v535 = vld [vmem:[#allocation9 + $0x108] sm:$0xff]
        %v536 = vld [vmem:[#allocation9 + $0x110] sm:$0xff]
        %v537 = vld [vmem:[#allocation9 + $0x118] sm:$0xff]
        %v538 = vmul.f32 %v442, %v534
        %v539 = vmul.f32 %v441, %v535
        %v540 = vmul.f32 %v440, %v536
        %v541 = vmul.f32 %v443, %v537
        %542 = vst [vmem:[#allocation2 + $0x100] sm:$0xff] %v538
        %543 = vst [vmem:[#allocation2 + $0x108] sm:$0xff] %v539
        %544 = vst [vmem:[#allocation2 + $0x110] sm:$0xff] %v540
        %545 = vst [vmem:[#allocation2 + $0x118] sm:$0xff] %v541
        %v546 = vld [vmem:[#allocation2] sm:$0xff]
        %v547 = vld [vmem:[#allocation2 + $0x8] sm:$0xff]
        %v548 = vld [vmem:[#allocation2 + $0x10] sm:$0xff]
        %v549 = vld [vmem:[#allocation2 + $0x18] sm:$0xff]
        %v550 = vld [vmem:[#allocation2 + $0x20] sm:$0xff]
        %v551 = vld [vmem:[#allocation2 + $0x28] sm:$0xff]
        %v552 = vld [vmem:[#allocation2 + $0x30] sm:$0xff]
        %v553 = vld [vmem:[#allocation2 + $0x38] sm:$0xff]
        %v554 = vld [vmem:[#allocation2 + $0x40] sm:$0xff]
        %v555 = vld [vmem:[#allocation2 + $0x48] sm:$0xff]
        %v556 = vld [vmem:[#allocation2 + $0x50] sm:$0xff]
        %v557 = vld [vmem:[#allocation2 + $0x58] sm:$0xff]
        %v558 = vld [vmem:[#allocation2 + $0x60] sm:$0xff]
        %v559 = vld [vmem:[#allocation2 + $0x68] sm:$0xff]
        %v560 = vld [vmem:[#allocation2 + $0x70] sm:$0xff]
        %v561 = vld [vmem:[#allocation2 + $0x78] sm:$0xff]
        %v562 = vld [vmem:[#allocation2 + $0x80] sm:$0xff]
        %v563 = vld [vmem:[#allocation2 + $0x88] sm:$0xff]
        %v564 = vld [vmem:[#allocation2 + $0x90] sm:$0xff]
        %v565 = vld [vmem:[#allocation2 + $0x98] sm:$0xff]
        %v566 = vld [vmem:[#allocation2 + $0xa0] sm:$0xff]
        %v567 = vld [vmem:[#allocation2 + $0xa8] sm:$0xff]
        %v568 = vld [vmem:[#allocation2 + $0xb0] sm:$0xff]
        %v569 = vld [vmem:[#allocation2 + $0xb8] sm:$0xff]
        %v570 = vld [vmem:[#allocation2 + $0xc0] sm:$0xff]
        %v571 = vld [vmem:[#allocation2 + $0xc8] sm:$0xff]
        %v572 = vld [vmem:[#allocation2 + $0xd0] sm:$0xff]
        %v573 = vld [vmem:[#allocation2 + $0xd8] sm:$0xff]
        %v574 = vld [vmem:[#allocation2 + $0xe0] sm:$0xff]
        %v575 = vld [vmem:[#allocation2 + $0xe8] sm:$0xff]
        %v576 = vld [vmem:[#allocation2 + $0xf0] sm:$0xff]
        %v577 = vld [vmem:[#allocation2 + $0xf8] sm:$0xff]
        %v578 = vld [vmem:[#allocation2 + $0x100] sm:$0xff]
        %v579 = vld [vmem:[#allocation2 + $0x108] sm:$0xff]
        %v580 = vld [vmem:[#allocation2 + $0x110] sm:$0xff]
        %v581 = vld [vmem:[#allocation2 + $0x118] sm:$0xff]
        %582 = vset.pattern.permute.xlu0 1
        %583 = vperm.xlu0 %582, %v285
        %v584 = vpop.permute.xlu0 %583
        %vm586 = vcmask 588800
        %v588 = vsel %vm586, %v283, 0
        %590 = vmatpush.msra.mxu0 0.0
        %591 = vmatpush.msra.mxu0 0.0
        %592 = vmatpush.msra.mxu0 0.0
        %593 = vmatpush.msra.mxu0 0.0
        %594 = vmatpush.msra.mxu0 0.0
        %595 = vmatpush.msra.mxu0 0.0
        %596 = vmatpush.msra.mxu0 0.0
        %597 = vmatpush.msra.mxu0 %v578
        %598 = vmatpush.msra.mxu0 %v574
        %599 = vmatpush.msra.mxu0 %v570
        %600 = vmatpush.msra.mxu0 %v566
        %601 = vmatpush.msra.mxu0 %v562
        %602 = vmatpush.msra.mxu0 %v558
        %603 = vmatpush.msra.mxu0 %v554
        %604 = vmatpush.msra.mxu0 %v550
        %605 = vmatpush.msra.mxu0 %v546
        %606 = vmatmul.f32.gmra.mxu0 %v588
        %v607 = vpop.f32.mrf.mxu0
        %v608 = vadd.f32 %v584, %v607
        %609 = vdwg.mxu0
        %610 = vmatpush.msra.mxu0 0.0
        %611 = vmatpush.msra.mxu0 0.0
        %612 = vmatpush.msra.mxu0 0.0
        %613 = vmatpush.msra.mxu0 0.0
        %614 = vmatpush.msra.mxu0 0.0
        %615 = vmatpush.msra.mxu0 0.0
        %616 = vmatpush.msra.mxu0 0.0
        %617 = vmatpush.msra.mxu0 %v579
        %618 = vmatpush.msra.mxu0 %v575
        %619 = vmatpush.msra.mxu0 %v571
        %620 = vmatpush.msra.mxu0 %v567
        %621 = vmatpush.msra.mxu0 %v563
        %622 = vmatpush.msra.mxu0 %v559
        %623 = vmatpush.msra.mxu0 %v555
        %624 = vmatpush.msra.mxu0 %v551
        %625 = vmatpush.msra.mxu0 %v547
        %626 = vmatmul.f32.gmra.mxu0 %v588
        %v627 = vpop.f32.mrf.mxu0
        %v628 = vadd.f32 %v584, %v627
        %629 = vdwg.mxu0
        %630 = vmatpush.msra.mxu0 0.0
        %631 = vmatpush.msra.mxu0 0.0
        %632 = vmatpush.msra.mxu0 0.0
        %633 = vmatpush.msra.mxu0 0.0
        %634 = vmatpush.msra.mxu0 0.0
        %635 = vmatpush.msra.mxu0 0.0
        %636 = vmatpush.msra.mxu0 0.0
        %637 = vmatpush.msra.mxu0 %v580
        %638 = vmatpush.msra.mxu0 %v576
        %639 = vmatpush.msra.mxu0 %v572
        %640 = vmatpush.msra.mxu0 %v568
        %641 = vmatpush.msra.mxu0 %v564
        %642 = vmatpush.msra.mxu0 %v560
        %643 = vmatpush.msra.mxu0 %v556
        %644 = vmatpush.msra.mxu0 %v552
        %645 = vmatpush.msra.mxu0 %v548
        %646 = vmatmul.f32.gmra.mxu0 %v588
        %v647 = vpop.f32.mrf.mxu0
        %v648 = vadd.f32 %v584, %v647
        %649 = vdwg.mxu0
        %650 = vmatpush.msra.mxu0 0.0
        %651 = vmatpush.msra.mxu0 0.0
        %652 = vmatpush.msra.mxu0 0.0
        %653 = vmatpush.msra.mxu0 0.0
        %654 = vmatpush.msra.mxu0 0.0
        %655 = vmatpush.msra.mxu0 0.0
        %656 = vmatpush.msra.mxu0 0.0
        %657 = vmatpush.msra.mxu0 %v581
        %658 = vmatpush.msra.mxu0 %v577
        %659 = vmatpush.msra.mxu0 %v573
        %660 = vmatpush.msra.mxu0 %v569
        %661 = vmatpush.msra.mxu0 %v565
        %662 = vmatpush.msra.mxu0 %v561
        %663 = vmatpush.msra.mxu0 %v557
        %664 = vmatpush.msra.mxu0 %v553
        %665 = vmatpush.msra.mxu0 %v549
        %666 = vmatmul.f32.gmra.mxu0 %v588
        %v667 = vpop.f32.mrf.mxu0
        %v668 = vadd.f32 %v584, %v667
        %669 = vdwg.mxu0
        %v670 = vmax.f32 %v608, 0.0
        %v671 = vmax.f32 %v628, 0.0
        %v672 = vmax.f32 %v648, 0.0
        %v673 = vmax.f32 %v668, 0.0
        %674 = vrot.lane.b32.xlu0 %v670, 68
        %v675 = vpop.permute.xlu0 %674
        %676 = vrot.lane.b32.xlu0 %v671, 68
        %v677 = vpop.permute.xlu0 %676
        %678 = vrot.lane.b32.xlu0 %v672, 68
        %v679 = vpop.permute.xlu0 %678
        %680 = vrot.lane.b32.xlu0 %v673, 68
        %v681 = vpop.permute.xlu0 %680
        %v682 = vsel %vm389, %v679, %v681
        %v683 = vsel %vm389, %v677, %v679
        %v684 = vsel %vm389, %v675, %v677
        %v685 = vsel %vm389, %v681, %v675
        %v686 = vld [vmem:[#allocation9] sm:$0xff]
        %v687 = vld [vmem:[#allocation9 + $0x8] sm:$0xff]
        %v688 = vld [vmem:[#allocation9 + $0x10] sm:$0xff]
        %v689 = vld [vmem:[#allocation9 + $0x18] sm:$0xff]
        %v690 = vmul.f32 %v685, %v686
        %v691 = vmul.f32 %v684, %v687
        %v692 = vmul.f32 %v683, %v688
        %v693 = vmul.f32 %v682, %v689
        %694 = vst [vmem:[#allocation2] sm:$0xff] %v690
        %695 = vst [vmem:[#allocation2 + $0x8] sm:$0xff] %v691
        %696 = vst [vmem:[#allocation2 + $0x10] sm:$0xff] %v692
        %697 = vst [vmem:[#allocation2 + $0x18] sm:$0xff] %v693
        %698 = vrot.lane.b32.xlu0 %v670, 64
        %v699 = vpop.permute.xlu0 %698
        %700 = vrot.lane.b32.xlu0 %v671, 64
        %v701 = vpop.permute.xlu0 %700
        %702 = vrot.lane.b32.xlu0 %v672, 64
        %v703 = vpop.permute.xlu0 %702
        %704 = vrot.lane.b32.xlu0 %v673, 64
        %v705 = vpop.permute.xlu0 %704
        %v706 = vsel %vm414, %v703, %v705
        %v707 = vsel %vm414, %v701, %v703
        %v708 = vsel %vm414, %v699, %v701
        %v709 = vsel %vm414, %v705, %v699
        %v710 = vld [vmem:[#allocation9 + $0x20] sm:$0xff]
        %v711 = vld [vmem:[#allocation9 + $0x28] sm:$0xff]
        %v712 = vld [vmem:[#allocation9 + $0x30] sm:$0xff]
        %v713 = vld [vmem:[#allocation9 + $0x38] sm:$0xff]
        %v714 = vmul.f32 %v709, %v710
        %v715 = vmul.f32 %v708, %v711
        %v716 = vmul.f32 %v707, %v712
        %v717 = vmul.f32 %v706, %v713
        %718 = vst [vmem:[#allocation2 + $0x20] sm:$0xff] %v714
        %719 = vst [vmem:[#allocation2 + $0x28] sm:$0xff] %v715
        %720 = vst [vmem:[#allocation2 + $0x30] sm:$0xff] %v716
        %721 = vst [vmem:[#allocation2 + $0x38] sm:$0xff] %v717
        %722 = vrot.lane.b32.xlu0 %v670, 60
        %v723 = vpop.permute.xlu0 %722
        %724 = vrot.lane.b32.xlu0 %v671, 60
        %v725 = vpop.permute.xlu0 %724
        %726 = vrot.lane.b32.xlu0 %v672, 60
        %v727 = vpop.permute.xlu0 %726
        %728 = vrot.lane.b32.xlu0 %v673, 60
        %v729 = vpop.permute.xlu0 %728
        %v730 = vsel %vm439, %v727, %v729
        %v731 = vsel %vm439, %v725, %v727
        %v732 = vsel %vm439, %v723, %v725
        %v733 = vsel %vm439, %v729, %v723
        %v734 = vld [vmem:[#allocation9 + $0x40] sm:$0xff]
        %v735 = vld [vmem:[#allocation9 + $0x48] sm:$0xff]
        %v736 = vld [vmem:[#allocation9 + $0x50] sm:$0xff]
        %v737 = vld [vmem:[#allocation9 + $0x58] sm:$0xff]
        %v738 = vmul.f32 %v733, %v734
        %v739 = vmul.f32 %v732, %v735
        %v740 = vmul.f32 %v731, %v736
        %v741 = vmul.f32 %v730, %v737
        %742 = vst [vmem:[#allocation2 + $0x40] sm:$0xff] %v738
        %743 = vst [vmem:[#allocation2 + $0x48] sm:$0xff] %v739
        %744 = vst [vmem:[#allocation2 + $0x50] sm:$0xff] %v740
        %745 = vst [vmem:[#allocation2 + $0x58] sm:$0xff] %v741
        %746 = vrot.lane.b32.xlu0 %v670, 4
        %v747 = vpop.permute.xlu0 %746
        %748 = vrot.lane.b32.xlu0 %v671, 4
        %v749 = vpop.permute.xlu0 %748
        %750 = vrot.lane.b32.xlu0 %v672, 4
        %v751 = vpop.permute.xlu0 %750
        %752 = vrot.lane.b32.xlu0 %v673, 4
        %v753 = vpop.permute.xlu0 %752
        %v754 = vsel %vm464, %v751, %v753
        %v755 = vsel %vm464, %v749, %v751
        %v756 = vsel %vm464, %v747, %v749
        %v757 = vsel %vm464, %v753, %v747
        %v758 = vld [vmem:[#allocation9 + $0x60] sm:$0xff]
        %v759 = vld [vmem:[#allocation9 + $0x68] sm:$0xff]
        %v760 = vld [vmem:[#allocation9 + $0x70] sm:$0xff]
        %v761 = vld [vmem:[#allocation9 + $0x78] sm:$0xff]
        %v762 = vmul.f32 %v757, %v758
        %v763 = vmul.f32 %v756, %v759
        %v764 = vmul.f32 %v755, %v760
        %v765 = vmul.f32 %v754, %v761
        %766 = vst [vmem:[#allocation2 + $0x60] sm:$0xff] %v762
        %767 = vst [vmem:[#allocation2 + $0x68] sm:$0xff] %v763
        %768 = vst [vmem:[#allocation2 + $0x70] sm:$0xff] %v764
        %769 = vst [vmem:[#allocation2 + $0x78] sm:$0xff] %v765
        %770 = vst [vmem:[#allocation2 + $0x80] sm:$0xff] %v670
        %771 = vst [vmem:[#allocation2 + $0x88] sm:$0xff] %v671
        %772 = vst [vmem:[#allocation2 + $0x90] sm:$0xff] %v672
        %773 = vst [vmem:[#allocation2 + $0x98] sm:$0xff] %v673
        %774 = vrot.lane.b32.xlu0 %v670, 124
        %v775 = vpop.permute.xlu0 %774
        %776 = vrot.lane.b32.xlu0 %v671, 124
        %v777 = vpop.permute.xlu0 %776
        %778 = vrot.lane.b32.xlu0 %v672, 124
        %v779 = vpop.permute.xlu0 %778
        %780 = vrot.lane.b32.xlu0 %v673, 124
        %v781 = vpop.permute.xlu0 %780
        %v782 = vsel %vm493, %v779, %v781
        %v783 = vsel %vm493, %v777, %v779
        %v784 = vsel %vm493, %v775, %v777
        %v785 = vsel %vm493, %v781, %v775
        %v786 = vld [vmem:[#allocation9 + $0xa0] sm:$0xff]
        %v787 = vld [vmem:[#allocation9 + $0xa8] sm:$0xff]
        %v788 = vld [vmem:[#allocation9 + $0xb0] sm:$0xff]
        %v789 = vld [vmem:[#allocation9 + $0xb8] sm:$0xff]
        %v790 = vmul.f32 %v784, %v786
        %v791 = vmul.f32 %v783, %v787
        %v792 = vmul.f32 %v782, %v788
        %v793 = vmul.f32 %v785, %v789
        %794 = vst [vmem:[#allocation2 + $0xa0] sm:$0xff] %v790
        %795 = vst [vmem:[#allocation2 + $0xa8] sm:$0xff] %v791
        %796 = vst [vmem:[#allocation2 + $0xb0] sm:$0xff] %v792
        %797 = vst [vmem:[#allocation2 + $0xb8] sm:$0xff] %v793
        %v798 = vld [vmem:[#allocation9 + $0xc0] sm:$0xff]
        %v799 = vld [vmem:[#allocation9 + $0xc8] sm:$0xff]
        %v800 = vld [vmem:[#allocation9 + $0xd0] sm:$0xff]
        %v801 = vld [vmem:[#allocation9 + $0xd8] sm:$0xff]
        %v802 = vmul.f32 %v684, %v798
        %v803 = vmul.f32 %v683, %v799
        %v804 = vmul.f32 %v682, %v800
        %v805 = vmul.f32 %v685, %v801
        %806 = vst [vmem:[#allocation2 + $0xc0] sm:$0xff] %v802
        %807 = vst [vmem:[#allocation2 + $0xc8] sm:$0xff] %v803
        %808 = vst [vmem:[#allocation2 + $0xd0] sm:$0xff] %v804
        %809 = vst [vmem:[#allocation2 + $0xd8] sm:$0xff] %v805
        %v810 = vld [vmem:[#allocation9 + $0xe0] sm:$0xff]
        %v811 = vld [vmem:[#allocation9 + $0xe8] sm:$0xff]
        %v812 = vld [vmem:[#allocation9 + $0xf0] sm:$0xff]
        %v813 = vld [vmem:[#allocation9 + $0xf8] sm:$0xff]
        %v814 = vmul.f32 %v708, %v810
        %v815 = vmul.f32 %v707, %v811
        %v816 = vmul.f32 %v706, %v812
        %v817 = vmul.f32 %v709, %v813
        %818 = vst [vmem:[#allocation2 + $0xe0] sm:$0xff] %v814
        %819 = vst [vmem:[#allocation2 + $0xe8] sm:$0xff] %v815
        %820 = vst [vmem:[#allocation2 + $0xf0] sm:$0xff] %v816
        %821 = vst [vmem:[#allocation2 + $0xf8] sm:$0xff] %v817
        %v822 = vld [vmem:[#allocation9 + $0x100] sm:$0xff]
        %v823 = vld [vmem:[#allocation9 + $0x108] sm:$0xff]
        %v824 = vld [vmem:[#allocation9 + $0x110] sm:$0xff]
        %v825 = vld [vmem:[#allocation9 + $0x118] sm:$0xff]
        %v826 = vmul.f32 %v732, %v822
        %v827 = vmul.f32 %v731, %v823
        %v828 = vmul.f32 %v730, %v824
        %v829 = vmul.f32 %v733, %v825
        %830 = vst [vmem:[#allocation2 + $0x100] sm:$0xff] %v826
        %831 = vst [vmem:[#allocation2 + $0x108] sm:$0xff] %v827
        %832 = vst [vmem:[#allocation2 + $0x110] sm:$0xff] %v828
        %833 = vst [vmem:[#allocation2 + $0x118] sm:$0xff] %v829
        %v834 = vld [vmem:[#allocation2] sm:$0xff]
        %v835 = vld [vmem:[#allocation2 + $0x8] sm:$0xff]
        %v836 = vld [vmem:[#allocation2 + $0x10] sm:$0xff]
        %v837 = vld [vmem:[#allocation2 + $0x18] sm:$0xff]
        %v838 = vld [vmem:[#allocation2 + $0x20] sm:$0xff]
        %v839 = vld [vmem:[#allocation2 + $0x28] sm:$0xff]
        %v840 = vld [vmem:[#allocation2 + $0x30] sm:$0xff]
        %v841 = vld [vmem:[#allocation2 + $0x38] sm:$0xff]
        %v842 = vld [vmem:[#allocation2 + $0x40] sm:$0xff]
        %v843 = vld [vmem:[#allocation2 + $0x48] sm:$0xff]
        %v844 = vld [vmem:[#allocation2 + $0x50] sm:$0xff]
        %v845 = vld [vmem:[#allocation2 + $0x58] sm:$0xff]
        %v846 = vld [vmem:[#allocation2 + $0x60] sm:$0xff]
        %v847 = vld [vmem:[#allocation2 + $0x68] sm:$0xff]
        %v848 = vld [vmem:[#allocation2 + $0x70] sm:$0xff]
        %v849 = vld [vmem:[#allocation2 + $0x78] sm:$0xff]
        %v850 = vld [vmem:[#allocation2 + $0x80] sm:$0xff]
        %v851 = vld [vmem:[#allocation2 + $0x88] sm:$0xff]
        %v852 = vld [vmem:[#allocation2 + $0x90] sm:$0xff]
        %v853 = vld [vmem:[#allocation2 + $0x98] sm:$0xff]
        %v854 = vld [vmem:[#allocation2 + $0xa0] sm:$0xff]
        %v855 = vld [vmem:[#allocation2 + $0xa8] sm:$0xff]
        %v856 = vld [vmem:[#allocation2 + $0xb0] sm:$0xff]
        %v857 = vld [vmem:[#allocation2 + $0xb8] sm:$0xff]
        %v858 = vld [vmem:[#allocation2 + $0xc0] sm:$0xff]
        %v859 = vld [vmem:[#allocation2 + $0xc8] sm:$0xff]
        %v860 = vld [vmem:[#allocation2 + $0xd0] sm:$0xff]
        %v861 = vld [vmem:[#allocation2 + $0xd8] sm:$0xff]
        %v862 = vld [vmem:[#allocation2 + $0xe0] sm:$0xff]
        %v863 = vld [vmem:[#allocation2 + $0xe8] sm:$0xff]
        %v864 = vld [vmem:[#allocation2 + $0xf0] sm:$0xff]
        %v865 = vld [vmem:[#allocation2 + $0xf8] sm:$0xff]
        %v866 = vld [vmem:[#allocation2 + $0x100] sm:$0xff]
        %v867 = vld [vmem:[#allocation2 + $0x108] sm:$0xff]
        %v868 = vld [vmem:[#allocation2 + $0x110] sm:$0xff]
        %v869 = vld [vmem:[#allocation2 + $0x118] sm:$0xff]
        %870 = vset.pattern.permute.xlu0 2
        %871 = vperm.xlu0 %870, %v285
        %v872 = vpop.permute.xlu0 %871
        %v875 = vsel %vm586, %v284, 0
        %877 = vmatpush.msra.mxu0 0.0
        %878 = vmatpush.msra.mxu0 0.0
        %879 = vmatpush.msra.mxu0 0.0
        %880 = vmatpush.msra.mxu0 0.0
        %881 = vmatpush.msra.mxu0 0.0
        %882 = vmatpush.msra.mxu0 0.0
        %883 = vmatpush.msra.mxu0 0.0
        %884 = vmatpush.msra.mxu0 %v866
        %885 = vmatpush.msra.mxu0 %v862
        %886 = vmatpush.msra.mxu0 %v858
        %887 = vmatpush.msra.mxu0 %v854
        %888 = vmatpush.msra.mxu0 %v850
        %889 = vmatpush.msra.mxu0 %v846
        %890 = vmatpush.msra.mxu0 %v842
        %891 = vmatpush.msra.mxu0 %v838
        %892 = vmatpush.msra.mxu0 %v834
        %893 = vmatmul.f32.gmra.mxu0 %v875
        %v894 = vpop.f32.mrf.mxu0
        %v895 = vadd.f32 %v872, %v894
        %896 = vdwg.mxu0
        %897 = vmatpush.msra.mxu0 0.0
        %898 = vmatpush.msra.mxu0 0.0
        %899 = vmatpush.msra.mxu0 0.0
        %900 = vmatpush.msra.mxu0 0.0
        %901 = vmatpush.msra.mxu0 0.0
        %902 = vmatpush.msra.mxu0 0.0
        %903 = vmatpush.msra.mxu0 0.0
        %904 = vmatpush.msra.mxu0 %v867
        %905 = vmatpush.msra.mxu0 %v863
        %906 = vmatpush.msra.mxu0 %v859
        %907 = vmatpush.msra.mxu0 %v855
        %908 = vmatpush.msra.mxu0 %v851
        %909 = vmatpush.msra.mxu0 %v847
        %910 = vmatpush.msra.mxu0 %v843
        %911 = vmatpush.msra.mxu0 %v839
        %912 = vmatpush.msra.mxu0 %v835
        %913 = vmatmul.f32.gmra.mxu0 %v875
        %v914 = vpop.f32.mrf.mxu0
        %v915 = vadd.f32 %v872, %v914
        %916 = vdwg.mxu0
        %917 = vmatpush.msra.mxu0 0.0
        %918 = vmatpush.msra.mxu0 0.0
        %919 = vmatpush.msra.mxu0 0.0
        %920 = vmatpush.msra.mxu0 0.0
        %921 = vmatpush.msra.mxu0 0.0
        %922 = vmatpush.msra.mxu0 0.0
        %923 = vmatpush.msra.mxu0 0.0
        %924 = vmatpush.msra.mxu0 %v868
        %925 = vmatpush.msra.mxu0 %v864
        %926 = vmatpush.msra.mxu0 %v860
        %927 = vmatpush.msra.mxu0 %v856
        %928 = vmatpush.msra.mxu0 %v852
        %929 = vmatpush.msra.mxu0 %v848
        %930 = vmatpush.msra.mxu0 %v844
        %931 = vmatpush.msra.mxu0 %v840
        %932 = vmatpush.msra.mxu0 %v836
        %933 = vmatmul.f32.gmra.mxu0 %v875
        %v934 = vpop.f32.mrf.mxu0
        %v935 = vadd.f32 %v872, %v934
        %936 = vdwg.mxu0
        %937 = vmatpush.msra.mxu0 0.0
        %938 = vmatpush.msra.mxu0 0.0
        %939 = vmatpush.msra.mxu0 0.0
        %940 = vmatpush.msra.mxu0 0.0
        %941 = vmatpush.msra.mxu0 0.0
        %942 = vmatpush.msra.mxu0 0.0
        %943 = vmatpush.msra.mxu0 0.0
        %944 = vmatpush.msra.mxu0 %v869
        %945 = vmatpush.msra.mxu0 %v865
        %946 = vmatpush.msra.mxu0 %v861
        %947 = vmatpush.msra.mxu0 %v857
        %948 = vmatpush.msra.mxu0 %v853
        %949 = vmatpush.msra.mxu0 %v849
        %950 = vmatpush.msra.mxu0 %v845
        %951 = vmatpush.msra.mxu0 %v841
        %952 = vmatpush.msra.mxu0 %v837
        %953 = vmatmul.f32.gmra.mxu0 %v875
        %v954 = vpop.f32.mrf.mxu0
        %v955 = vadd.f32 %v872, %v954
        %956 = vdwg.mxu0
        %v957 = vmax.f32 %v895, 0.0
        %v958 = vmax.f32 %v915, 0.0
        %v959 = vmax.f32 %v935, 0.0
        %v960 = vmax.f32 %v955, 0.0
        %961 = vset.pattern.permute.xlu0 3
        %962 = vperm.xlu0 %961, %v285
        %v963 = vpop.permute.xlu0 %962
        %v965 = vmul.f32 %v963, %v957
        %v966 = vmul.f32 %v963, %v958
        %v967 = vmul.f32 %v963, %v959
        %v968 = vmul.f32 %v963, %v960
        %v969 = vrot.slane %v965, 4
        %v970 = vadd.f32 %v965, %v969
        %v971 = vrot.slane %v970, 2
        %v972 = vadd.f32 %v970, %v971
        %v973 = vrot.slane %v972, 1
        %v974 = vadd.f32 %v972, %v973
        %v975 = vrot.slane %v966, 4
        %v976 = vadd.f32 %v966, %v975
        %v977 = vrot.slane %v976, 2
        %v978 = vadd.f32 %v976, %v977
        %v979 = vrot.slane %v978, 1
        %v980 = vadd.f32 %v978, %v979
        %v981 = vrot.slane %v967, 4
        %v982 = vadd.f32 %v967, %v981
        %v983 = vrot.slane %v982, 2
        %v984 = vadd.f32 %v982, %v983
        %v985 = vrot.slane %v984, 1
        %v986 = vadd.f32 %v984, %v985
        %v987 = vrot.slane %v968, 4
        %v988 = vadd.f32 %v968, %v987
        %v989 = vrot.slane %v988, 2
        %v990 = vadd.f32 %v988, %v989
        %v991 = vrot.slane %v990, 1
        %v992 = vadd.f32 %v990, %v991
        %s993 = sld [smem:[#allocation3]]
        %v994 = vstv %s993
        %v995 = vadd.f32 %v974, %v994
        %v996 = vadd.f32 %v980, %v994
        %v997 = vadd.f32 %v986, %v994
        %v998 = vadd.f32 %v992, %v994
        %v1003 = vrot.slane %v996, 7
        %v1004 = vrot.slane %v997, 6
        %v1005 = vrot.slane %v998, 5
        %vm1006 = vcmask 1040384
        %v1007 = vsel %vm1006, %v995, %v1003
        %vm1008 = vcmask 1042434
        %v1009 = vsel %vm1008, %v1004, %v1005
        %vm1010 = vcmask 1041408
        %v1011 = vsel %vm1010, %v1007, %v1009
        %v1013 = vlaneseq
        %vm1014 = vcmp.ge.s32.totalorder %v1013, 0
        %vm1015 = vcmp.lt.s32.totalorder %v1013, 512
        %vm1016 = vmand %vm1014, %vm1015
        %1017 = vst.msk [vmem:[%s249] sm:$0xf] %vm1016, %v1011
        %s1018 = sand.u32 %s120, 1
        %s1019 = scalar_lea.sflag [#allocation6], %s1018
        %s1020 = sand.u32 %s120, 1
        %s1021 = smul.addr %s1020, 4
        %s1022 = scalar_lea.vmem [#allocation10], %s1021
        // Predicated region
        $region49: #{tpu_custom_call.1} parent=35 // pred_check
          %p1023 = pneg %p130
        $region50: #{tpu_custom_call.1} parent=35 // pred_check_branch
          %1025 = sbr.rel (%p1023) target = $region52
        $region51: #{tpu_custom_call.1} parent=35 // pred_region
          %1027 = vsyncadd %s1019, 0
          %s1028 = smul.addr %s23, 4
          %s1029 = scalar_lea.hbm %s4, %s1028
          %s1031 = sshll.u32 %s1022, 4
          %s1032 = int_to_ptr.vmem [resolvable:$true] %s1031
          %s1033 = sshll.u32 %s1029, 4
          %s1034 = int_to_ptr.hbm [resolvable:$true] %s1033
          %1036 = dma.vmem_to_hbm [thread:$0]  %s1032, 64, %s1034, %s1019
        $region52: #{tpu_custom_call.1} parent=35 // pred_fallthru
          _
      $region36: #{tpu_custom_call.1} parent=5 // pred_fallthru
        _
      %p1037 = scmp.le.s32.totalorder 2, %s18
      // Predicated region
      $region53: #{tpu_custom_call.1} parent=5 // pred_check
        %p1038 = pneg %p1037
      $region54: #{tpu_custom_call.1} parent=5 // pred_check_branch
        %1040 = sbr.rel (%p1038) target = $region56
      $region55: #{tpu_custom_call.1} parent=5 // pred_region
        %s1041 = ssub.s32 %s18, 2
        // Predicated region
        $region57: #{tpu_custom_call.1} parent=55 // pred_check
          %p1042 = pneg %p136
        $region58: #{tpu_custom_call.1} parent=55 // pred_check_branch
          %1044 = sbr.rel (%p1042) target = $region60
        $region59: #{tpu_custom_call.1} parent=55 // pred_region
          %s1045 = sand.u32 %s121, 1
          %s1046 = scalar_lea.sflag [#allocation6], %s1045
          %s1047 = sand.u32 %s121, 1
          %s1048 = smul.addr %s1047, 4
          %s1049 = scalar_lea.vmem [#allocation10], %s1048
          %1051 = dma.done %s1046, 64
        $region60: #{tpu_custom_call.1} parent=55 // pred_fallthru
          _
      $region56: #{tpu_custom_call.1} parent=5 // pred_fallthru
        _
    $region6: #{tpu_custom_call.1} parent=1 // loop_footer
      %s22 = sadd.s32 1, %s18
    $region7: #{tpu_custom_call.1} parent=1 // loop_footer_branch
      %17 = sbr.rel target = $region3
    $region8: #{tpu_custom_call.1} parent=1 // loop_exit
      _
    %1052 = vsyncpa [#allocation5], 1
    %s1053 = scalar_lea.sflag [#allocation5], 1
    %1054 = vsyncpa %s1053, 1
    %1055 = vsyncpa [#allocation8], 1
    %1056 = vsyncpa [#allocation6], 1
    %s1057 = scalar_lea.sflag [#allocation6], 1
    %1058 = vsyncpa %s1057, 1

</llo_original>
